<compile_context>
chip_gen: v6e
topology: v6e:2x2x1
jax: 0.10.0
libtpu: 0.0.40
codegen_flags: <defaults>
</compile_context>

<pallas_src>
import math

import jax
import jax.numpy as jnp
import numpy as np
from jax.experimental import pallas as pl
from jax.experimental.pallas import tpu as pltpu

# ----------------------- small, module-consistent shapes -----------------------
DIM = 64                  # channels C
A_SP = 8                  # spatial height a (GlobalFilter h)
B_SP = 8                  # spatial width  b (GlobalFilter w = b//2 + 1)
W_SP = B_SP // 2 + 1      # rfft2 frequency width
N_TOK = A_SP * B_SP       # N = a*b tokens
F_SP = A_SP * W_SP        # number of rfft2 frequency bins
BATCH = 2                 # B ;  B*C = 128 -> one full lane chunk
LANE = 128                # TPU lane width


# ------------------------------ one-time init ----------------------------------
def build_dft_operators(a, b):
    """Real matrices implementing ortho rfft2 / irfft2 over an (a, b) grid.

    Forward : y = Ffwd @ x   with Ffwd = [Fr; Fi]  (2F, N): y[:F]=Re, y[F:]=Im
    Inverse : out = Ginv @ [zr; zi]   with Ginv = [Gr | Gi]  (N, 2F)
    The Hermitian fold factor ck and the discarded Im parts at k=0 / Nyquist
    reproduce torch/jax irfft2 exactly, even for non-Hermitian spectra.
    """
    w = b // 2 + 1
    jj, nn = np.meshgrid(np.arange(a), np.arange(b), indexing="ij")    # spatial (j, n)
    mm_, kk = np.meshgrid(np.arange(a), np.arange(w), indexing="ij")   # frequency (m, k)
    sp_j, sp_n = jj.reshape(-1), nn.reshape(-1)                        # (N,)
    fq_m, fq_k = mm_.reshape(-1), kk.reshape(-1)                       # (F,)
    theta = 2.0 * np.pi * (np.outer(fq_m, sp_j) / a + np.outer(fq_k, sp_n) / b)  # (F, N)
    scale = 1.0 / math.sqrt(a * b)
    fr = np.cos(theta) * scale
    fi = -np.sin(theta) * scale
    # Interior k columns appear twice in the full (Hermitian-extended) spectrum.
    ck = np.where((fq_k == 0) | ((b % 2 == 0) & (fq_k == b // 2)), 1.0, 2.0)
    gr = np.cos(theta.T) * ck[None, :] * scale                          # (N, F)
    gi = -np.sin(theta.T) * ck[None, :] * scale                         # (N, F)
    ffwd = np.concatenate([fr, fi], axis=0)                             # (2F, N)
    ginv = np.concatenate([gr, gi], axis=1)                             # (N, 2F)
    return jnp.asarray(ffwd, jnp.float32), jnp.asarray(ginv, jnp.float32)


def pack_spectral_weight(complex_weight, lane=LANE):
    """Pack the learned complex weight into one (2, 2F, lane) slab.

    Wa = [wre; wre] multiplies the stacked spectrum y = [Re; Im];
    Wb = [-wim; wim] multiplies roll(y, F) = [Im; Re], so
      z = y*Wa + roll(y,F)*Wb = [Re*wre - Im*wim ; Im*wre + Re*wim].
    Tiled only across one lane chunk (channel pattern has period C), never B x.
    """
    a, w, c, _ = complex_weight.shape
    f = a * w
    assert lane % c == 0  # TODO(synk): general C needs per-chunk weight slabs
    reps = lane // c
    wre = jnp.tile(complex_weight[..., 0].reshape(f, c), (1, reps))     # (F, lane)
    wim = jnp.tile(complex_weight[..., 1].reshape(f, c), (1, reps))     # (F, lane)
    wa = jnp.concatenate([wre, wre], axis=0)                            # (2F, lane)
    wb = jnp.concatenate([-wim, wim], axis=0)                           # (2F, lane)
    return jnp.stack([wa, wb], axis=0).astype(jnp.float32)              # (2, 2F, lane)


# --------------------------------- the kernel -----------------------------------
def global_filter_kernel(x_ref, ffwd_ref, ginv_ref, wab_ref, o_ref):
    f = ffwd_ref.shape[0] // 2
    x = x_ref[...]                                                       # (N, 128)

    # Forward rfft2 as a single stacked matmul: y = [Re X ; Im X].
    y = jnp.dot(ffwd_ref[...], x,
                preferred_element_type=jnp.float32,
                precision=jax.lax.Precision.HIGHEST)                     # (2F, 128)

    # Complex spectral multiply on the stacked form (XLU roll swaps halves).
    y_swap = pltpu.roll(y, shift=f, axis=0)                              # [Im X ; Re X]
    z = y * wab_ref[0] + y_swap * wab_ref[1]                             # [zr ; zi]

    # Inverse rfft2: one fused matmul with Ginv = [Gr | Gi]; lane-dense store.
    o_ref[...] = jnp.dot(ginv_ref[...], z,
                         preferred_element_type=jnp.float32,
                         precision=jax.lax.Precision.HIGHEST)            # (N, 128)


# ------------------------------- pallas wrapper ----------------------------------
def global_filter_apply(x, ffwd, ginv, wab):
    B, N, C = x.shape
    BC = B * C
    assert BC % LANE == 0  # TODO(synk): pad the folded lane axis for general B*C

    # Fold batch into the lane axis.  (A real model would keep the surrounding
    # blocks in this folded (N, B*C) layout so these transposes disappear.)
    x2d = jnp.transpose(x, (1, 0, 2)).reshape(N, BC)
    n_chunks = BC // LANE

    out2d = pl.pallas_call(
        global_filter_kernel,
        out_shape=jax.ShapeDtypeStruct((N, BC), jnp.float32),
        grid_spec=pltpu.PrefetchScalarGridSpec(
            num_scalar_prefetch=0,
            grid=(n_chunks,),                               # 128-lane chunks
            in_specs=[
                pl.BlockSpec((N, LANE), lambda i: (0, i)),      # activations
                pl.BlockSpec(ffwd.shape, lambda i: (0, 0)),     # constant operator
                pl.BlockSpec(ginv.shape, lambda i: (0, 0)),     # constant operator
                pl.BlockSpec(wab.shape, lambda i: (0, 0, 0)),   # constant weight slab
            ],
            out_specs=pl.BlockSpec((N, LANE), lambda i: (0, i)),
        ),
        compiler_params=pltpu.CompilerParams(
            dimension_semantics=("parallel",)),
    )(x2d, ffwd, ginv, wab)

    return out2d.reshape(N, B, C).transpose(1, 0, 2)        # back to (B, N, C)


# ----------------------------- pure-JAX reference ---------------------------------
def reference_global_filter(x, complex_weight):
    B, N, C = x.shape
    a = b = int(math.sqrt(N))
    xs = x.reshape(B, a, b, C).astype(jnp.float32)
    f = jnp.fft.rfft2(xs, axes=(1, 2), norm="ortho")
    w = complex_weight[..., 0] + 1j * complex_weight[..., 1]   # (a, b//2+1, C)
    y = jnp.fft.irfft2(f * w[None], s=(a, b), axes=(1, 2), norm="ortho")
    return y.reshape(B, N, C)


# -------------------------------------- main ---------------------------------------
if __name__ == "__main__":
    key = jax.random.PRNGKey(0)
    kx, kw = jax.random.split(key)
    x = jax.random.normal(kx, (BATCH, N_TOK, DIM), jnp.float32)
    # nn.Parameter(torch.randn(h, w, dim, 2) * 0.02)
    complex_weight = jax.random.normal(kw, (A_SP, W_SP, DIM, 2), jnp.float32) * 0.02

    # One-time init (hoisted out of the hot path; cached in a real model).
    ffwd, ginv = build_dft_operators(A_SP, B_SP)
    wab = pack_spectral_weight(complex_weight)

    apply_fn = jax.jit(global_filter_apply)
    out = apply_fn(x, ffwd, ginv, wab)
    jax.block_until_ready(out)

    ref = reference_global_filter(x, complex_weight)
    abs_err = float(jnp.max(jnp.abs(out - ref)))
    rel_err = abs_err / (float(jnp.max(jnp.abs(ref))) + 1e-12)
    # DFT matrices are exact and matmuls run at HIGHEST precision, so only
    # f32 rounding separates kernel and FFT reference.
    if not (rel_err < 2e-3):
        raise AssertionError(
            f"kernel/reference mismatch: max abs err={abs_err}, rel err={rel_err}")

    print("KERNEL_OK")
</pallas_src>

<mosaic_0001>
module attributes {stable_mosaic.version = 11 : i64} {
  func.func @global_filter_kernel(%arg0: i32, %arg1: memref<64x128xf32, #tpu.memory_space<vmem>>, %arg2: memref<80x64xf32, #tpu.memory_space<vmem>>, %arg3: memref<64x80xf32, #tpu.memory_space<vmem>>, %arg4: memref<2x80x128xf32, #tpu.memory_space<vmem>>, %arg5: memref<64x128xf32, #tpu.memory_space<vmem>>) attributes {dimension_semantics = [#tpu.dimension_semantics<parallel>], iteration_bounds = array<i64: 1>, scalar_prefetch = 0 : i64, scratch_operands = 0 : i64, tpu.core_type = #tpu.core_type<tc>, window_params = [{transform_indices = @transform_0, window_bounds = array<i64: 64, 128>}, {pipeline_mode = #tpu.pipeline_mode<synchronous>, transform_indices = @transform_1, window_bounds = array<i64: 80, 64>}, {pipeline_mode = #tpu.pipeline_mode<synchronous>, transform_indices = @transform_2, window_bounds = array<i64: 64, 80>}, {pipeline_mode = #tpu.pipeline_mode<synchronous>, transform_indices = @transform_3, window_bounds = array<i64: 2, 80, 128>}, {transform_indices = @transform_4, window_bounds = array<i64: 64, 128>}]} {
    %c0 = arith.constant 0 : index
    %c0_0 = arith.constant 0 : index
    %0 = vector.load %arg1[%c0, %c0_0] : memref<64x128xf32, #tpu.memory_space<vmem>>, vector<64x128xf32>
    %c0_1 = arith.constant 0 : index
    %c0_2 = arith.constant 0 : index
    %1 = vector.load %arg2[%c0_1, %c0_2] : memref<80x64xf32, #tpu.memory_space<vmem>>, vector<80x64xf32>
    %cst = arith.constant dense<0.000000e+00> : vector<80x128xf32>
    %2 = tpu.matmul %1, %0, %cst {dimension_numbers = #tpu.dot_dimension_numbers<[1], [0], [0], [1], [0, 0, 1, 1], [], []>, precision = #tpu.contract_precision<fp32>} : vector<80x64xf32>, vector<64x128xf32>, vector<80x128xf32> -> vector<80x128xf32>
    %c40_i32 = arith.constant 40 : i32
    %3 = tpu.dynamic_rotate %2 by %c40_i32 dim 0 : vector<80x128xf32>, i32 -> vector<80x128xf32>
    %c0_3 = arith.constant 0 : index
    %c0_4 = arith.constant 0 : index
    %c0_5 = arith.constant 0 : index
    %4 = vector.load %arg4[%c0_3, %c0_4, %c0_5] : memref<2x80x128xf32, #tpu.memory_space<vmem>>, vector<1x80x128xf32>
    %5 = vector.shape_cast %4 : vector<1x80x128xf32> to vector<80x128xf32>
    %6 = arith.mulf %2, %5 : vector<80x128xf32>
    %c1 = arith.constant 1 : index
    %c0_6 = arith.constant 0 : index
    %c0_7 = arith.constant 0 : index
    %7 = vector.load %arg4[%c1, %c0_6, %c0_7] : memref<2x80x128xf32, #tpu.memory_space<vmem>>, vector<1x80x128xf32>
    %8 = vector.shape_cast %7 : vector<1x80x128xf32> to vector<80x128xf32>
    %9 = arith.mulf %3, %8 : vector<80x128xf32>
    %10 = arith.addf %6, %9 : vector<80x128xf32>
    %c0_8 = arith.constant 0 : index
    %c0_9 = arith.constant 0 : index
    %11 = vector.load %arg3[%c0_8, %c0_9] : memref<64x80xf32, #tpu.memory_space<vmem>>, vector<64x80xf32>
    %cst_10 = arith.constant dense<0.000000e+00> : vector<64x128xf32>
    %12 = tpu.matmul %11, %10, %cst_10 {dimension_numbers = #tpu.dot_dimension_numbers<[1], [0], [0], [1], [0, 0, 1, 1], [], []>, precision = #tpu.contract_precision<fp32>} : vector<64x80xf32>, vector<80x128xf32>, vector<64x128xf32> -> vector<64x128xf32>
    %c0_11 = arith.constant 0 : index
    %c0_12 = arith.constant 0 : index
    %13 = vector.load %arg5[%c0_11, %c0_12] : memref<64x128xf32, #tpu.memory_space<vmem>>, vector<64x128xf32>
    tpu.vector_store %arg5[%c0_11, %c0_12], %12 {strides = array<i32>} : memref<64x128xf32, #tpu.memory_space<vmem>>, vector<64x128xf32>,
    return
  }
  func.func @transform_0(%arg0: i32) -> (i32, i32) {
    %c0_i32 = arith.constant 0 : i32
    %c0_i32_0 = arith.constant 0 : i32
    return %c0_i32, %arg0 : i32, i32
  }
  func.func @transform_1(%arg0: i32) -> (i32, i32) {
    %c0_i32 = arith.constant 0 : i32
    %c0_i32_0 = arith.constant 0 : i32
    %c0_i32_1 = arith.constant 0 : i32
    return %c0_i32, %c0_i32_0 : i32, i32
  }
  func.func @transform_2(%arg0: i32) -> (i32, i32) {
    %c0_i32 = arith.constant 0 : i32
    %c0_i32_0 = arith.constant 0 : i32
    %c0_i32_1 = arith.constant 0 : i32
    return %c0_i32, %c0_i32_0 : i32, i32
  }
  func.func @transform_3(%arg0: i32) -> (i32, i32, i32) {
    %c0_i32 = arith.constant 0 : i32
    %c0_i32_0 = arith.constant 0 : i32
    %c0_i32_1 = arith.constant 0 : i32
    %c0_i32_2 = arith.constant 0 : i32
    return %c0_i32, %c0_i32_0, %c0_i32_1 : i32, i32, i32
  }
  func.func @transform_4(%arg0: i32) -> (i32, i32) {
    %c0_i32 = arith.constant 0 : i32
    %c0_i32_0 = arith.constant 0 : i32
    return %c0_i32, %arg0 : i32, i32
  }
}

</mosaic_0001>

<llo_original>
// kernel: global_filter_apply.1
$region0: #{global_filter_apply.1}
  #allocation0 [shape = 'u32[]', space=smem, size = 0x4, offset = 0x4, fixed_abs, tag = 'smem constant byte address 0x4 - core index']
  #allocation1 [shape = 'u32[144,128]{1,0:T(1,128)}', space=vmem, size = 0x12000, scoped, tag = 'internal scratch']
  %s0 = inlined_call_operand.vmem [shape: f32[64,128], index: 0, kind: input, shape index: {}]
  %s1 = inlined_call_operand.vmem [shape: f32[80,64], index: 1, kind: input, shape index: {}]
  %s2 = inlined_call_operand.vmem [shape: f32[64,80], index: 2, kind: input, shape index: {}]
  %s3 = inlined_call_operand.vmem [shape: f32[2,80,128], index: 3, kind: input, shape index: {}]
  %s4 = inlined_call_operand.vmem [shape: f32[64,128], index: 4, kind: output, shape index: {}]
  %s5 = sld [smem:[#allocation0]]
  $region26: #{global_filter_apply.1} parent=0
    _
  %s7 = ssub.s32 1, %s5
  %s8 = scalar_select 0, %s7, %s5
  // Predicated region
  $region2: #{global_filter_apply.1} parent=0 // pred_check
    _
  $region3: #{global_filter_apply.1} parent=0 // pred_check_branch
    %10 = sbr.rel (0) target = $region5
  $region4: #{global_filter_apply.1} parent=0 // pred_region
    _
  $region5: #{global_filter_apply.1} parent=0 // pred_fallthru
    _
  // Predicated region
  $region6: #{global_filter_apply.1} parent=0 // pred_check
    _
  $region7: #{global_filter_apply.1} parent=0 // pred_check_branch
    %12 = sbr.rel (0) target = $region9
  $region8: #{global_filter_apply.1} parent=0 // pred_region
    _
  $region9: #{global_filter_apply.1} parent=0 // pred_fallthru
    _
  // Predicated region
  $region10: #{global_filter_apply.1} parent=0 // pred_check
    _
  $region11: #{global_filter_apply.1} parent=0 // pred_check_branch
    %14 = sbr.rel (0) target = $region13
  $region12: #{global_filter_apply.1} parent=0 // pred_region
    _
  $region13: #{global_filter_apply.1} parent=0 // pred_fallthru
    _
  // Predicated region
  $region14: #{global_filter_apply.1} parent=0 // pred_check
    _
  $region15: #{global_filter_apply.1} parent=0 // pred_check_branch
    %16 = sbr.rel (0) target = $region17
  $region16: #{global_filter_apply.1} parent=0 // pred_region
    _
  $region17: #{global_filter_apply.1} parent=0 // pred_fallthru
    _
  %v17 = vld [vmem:[%s0] sm:$0xff]
  %v18 = vld [vmem:[%s0 + $0x8] sm:$0xff]
  %v19 = vld [vmem:[%s0 + $0x10] sm:$0xff]
  %v20 = vld [vmem:[%s0 + $0x18] sm:$0xff]
  %v21 = vld [vmem:[%s0 + $0x20] sm:$0xff]
  %v22 = vld [vmem:[%s0 + $0x28] sm:$0xff]
  %v23 = vld [vmem:[%s0 + $0x30] sm:$0xff]
  %v24 = vld [vmem:[%s0 + $0x38] sm:$0xff]
  %v25 = vld [vmem:[%s1] sm:$0xff]
  %v26 = vld [vmem:[%s1 + $0x8] sm:$0xff]
  %v27 = vld [vmem:[%s1 + $0x10] sm:$0xff]
  %v28 = vld [vmem:[%s1 + $0x18] sm:$0xff]
  %v29 = vld [vmem:[%s1 + $0x20] sm:$0xff]
  %v30 = vld [vmem:[%s1 + $0x28] sm:$0xff]
  %v31 = vld [vmem:[%s1 + $0x30] sm:$0xff]
  %v32 = vld [vmem:[%s1 + $0x38] sm:$0xff]
  %v33 = vld [vmem:[%s1 + $0x40] sm:$0xff]
  %v34 = vld [vmem:[%s1 + $0x48] sm:$0xff]
  %vm35 = vcmask 523264
  %v37 = vsel %vm35, %v25, 0
  %v40 = vsel %vm35, %v26, 0
  %v43 = vsel %vm35, %v27, 0
  %v46 = vsel %vm35, %v28, 0
  %v49 = vsel %vm35, %v29, 0
  %v52 = vsel %vm35, %v30, 0
  %v55 = vsel %vm35, %v31, 0
  %v58 = vsel %vm35, %v32, 0
  %v61 = vsel %vm35, %v33, 0
  %v64 = vsel %vm35, %v34, 0
  %66 = vmatprep.subr.mxu0 0.0
  %67 = vmatpush1.msra.mxu0 0.0
  %68 = vmatprep.subr.mxu0 0.0
  %69 = vmatpush1.msra.mxu0 0.0
  %70 = vmatprep.subr.mxu0 0.0
  %71 = vmatpush1.msra.mxu0 0.0
  %72 = vmatprep.subr.mxu0 0.0
  %73 = vmatpush1.msra.mxu0 0.0
  %74 = vmatprep.subr.mxu0 0.0
  %75 = vmatpush1.msra.mxu0 0.0
  %76 = vmatprep.subr.mxu0 0.0
  %77 = vmatpush1.msra.mxu0 0.0
  %78 = vmatprep.subr.mxu0 0.0
  %79 = vmatpush1.msra.mxu0 0.0
  %80 = vmatprep.subr.mxu0 0.0
  %81 = vmatpush1.msra.mxu0 0.0
  %82 = vmatprep.subr.mxu0 0.0
  %v83 = vand.u32 %v24, 4294901760
  %84 = vmatpush1.msra.mxu0 %v83
  %85 = vmatprep.subr.mxu0 0.0
  %v86 = vand.u32 %v23, 4294901760
  %87 = vmatpush1.msra.mxu0 %v86
  %88 = vmatprep.subr.mxu0 0.0
  %v89 = vand.u32 %v22, 4294901760
  %90 = vmatpush1.msra.mxu0 %v89
  %91 = vmatprep.subr.mxu0 0.0
  %v92 = vand.u32 %v21, 4294901760
  %93 = vmatpush1.msra.mxu0 %v92
  %94 = vmatprep.subr.mxu0 0.0
  %v95 = vand.u32 %v20, 4294901760
  %96 = vmatpush1.msra.mxu0 %v95
  %97 = vmatprep.subr.mxu0 0.0
  %v98 = vand.u32 %v19, 4294901760
  %99 = vmatpush1.msra.mxu0 %v98
  %100 = vmatprep.subr.mxu0 0.0
  %v101 = vand.u32 %v18, 4294901760
  %102 = vmatpush1.msra.mxu0 %v101
  %103 = vmatprep.subr.mxu0 0.0
  %v104 = vand.u32 %v17, 4294901760
  %105 = vmatpush1.msra.mxu0 %v104
  %106 = vmatprep.subr.mxu0 0.0
  %107 = vmatpush2.msra.mxu0 0.0
  %108 = vmatprep.subr.mxu0 0.0
  %109 = vmatpush2.msra.mxu0 0.0
  %110 = vmatprep.subr.mxu0 0.0
  %111 = vmatpush2.msra.mxu0 0.0
  %112 = vmatprep.subr.mxu0 0.0
  %113 = vmatpush2.msra.mxu0 0.0
  %114 = vmatprep.subr.mxu0 0.0
  %115 = vmatpush2.msra.mxu0 0.0
  %116 = vmatprep.subr.mxu0 0.0
  %117 = vmatpush2.msra.mxu0 0.0
  %118 = vmatprep.subr.mxu0 0.0
  %119 = vmatpush2.msra.mxu0 0.0
  %120 = vmatprep.subr.mxu0 0.0
  %121 = vmatpush2.msra.mxu0 0.0
  %122 = vmatprep.subr.mxu0 0.0
  %123 = vmatpush2.msra.mxu0 0.0
  %124 = vmatprep.subr.mxu0 0.0
  %125 = vmatpush2.msra.mxu0 0.0
  %126 = vmatprep.subr.mxu0 0.0
  %127 = vmatpush2.msra.mxu0 0.0
  %128 = vmatprep.subr.mxu0 0.0
  %129 = vmatpush2.msra.mxu0 0.0
  %130 = vmatprep.subr.mxu0 0.0
  %131 = vmatpush2.msra.mxu0 0.0
  %132 = vmatprep.subr.mxu0 0.0
  %133 = vmatpush2.msra.mxu0 0.0
  %134 = vmatprep.subr.mxu0 0.0
  %135 = vmatpush2.msra.mxu0 0.0
  %136 = vmatprep.subr.mxu0 0.0
  %137 = vmatpush2.msra.mxu0 0.0
  %138 = vmatprep.mubr.f32.mxu0 0.0
  %v139 = vand.u32 %v37, 4294901760
  %v140 = vsub.f32 %v37, %v139
  %v141 = vand.u32 %v140, 4294901760
  %v142 = vsub.f32 %v140, %v141
  %v143 = vand.u32 %v142, 4294901760
  %144 = vmatmul.mubr.f32.gmra.mxu0 %v143
  %v145 = vpop.f32.mrf.mxu0
  %v146 = vadd.f32 0.0, %v145
  %v147 = vpop.f32.mrf.mxu0
  %148 = vmatprep.mubr.f32.mxu0 0.0
  %v149 = vand.u32 %v40, 4294901760
  %v150 = vsub.f32 %v40, %v149
  %v151 = vand.u32 %v150, 4294901760
  %v152 = vsub.f32 %v150, %v151
  %v153 = vand.u32 %v152, 4294901760
  %154 = vmatmul.mubr.f32.gmra.mxu0 %v153
  %v155 = vpop.f32.mrf.mxu0
  %v156 = vadd.f32 0.0, %v155
  %v157 = vpop.f32.mrf.mxu0
  %158 = vmatprep.mubr.f32.mxu0 0.0
  %v159 = vand.u32 %v43, 4294901760
  %v160 = vsub.f32 %v43, %v159
  %v161 = vand.u32 %v160, 4294901760
  %v162 = vsub.f32 %v160, %v161
  %v163 = vand.u32 %v162, 4294901760
  %164 = vmatmul.mubr.f32.gmra.mxu0 %v163
  %v165 = vpop.f32.mrf.mxu0
  %v166 = vadd.f32 0.0, %v165
  %v167 = vpop.f32.mrf.mxu0
  %168 = vmatprep.mubr.f32.mxu0 0.0
  %v169 = vand.u32 %v46, 4294901760
  %v170 = vsub.f32 %v46, %v169
  %v171 = vand.u32 %v170, 4294901760
  %v172 = vsub.f32 %v170, %v171
  %v173 = vand.u32 %v172, 4294901760
  %174 = vmatmul.mubr.f32.gmra.mxu0 %v173
  %v175 = vpop.f32.mrf.mxu0
  %v176 = vadd.f32 0.0, %v175
  %v177 = vpop.f32.mrf.mxu0
  %178 = vmatprep.mubr.f32.mxu0 0.0
  %v179 = vand.u32 %v49, 4294901760
  %v180 = vsub.f32 %v49, %v179
  %v181 = vand.u32 %v180, 4294901760
  %v182 = vsub.f32 %v180, %v181
  %v183 = vand.u32 %v182, 4294901760
  %184 = vmatmul.mubr.f32.gmra.mxu0 %v183
  %v185 = vpop.f32.mrf.mxu0
  %v186 = vadd.f32 0.0, %v185
  %v187 = vpop.f32.mrf.mxu0
  %188 = vmatprep.mubr.f32.mxu0 0.0
  %v189 = vand.u32 %v52, 4294901760
  %v190 = vsub.f32 %v52, %v189
  %v191 = vand.u32 %v190, 4294901760
  %v192 = vsub.f32 %v190, %v191
  %v193 = vand.u32 %v192, 4294901760
  %194 = vmatmul.mubr.f32.gmra.mxu0 %v193
  %v195 = vpop.f32.mrf.mxu0
  %v196 = vadd.f32 0.0, %v195
  %v197 = vpop.f32.mrf.mxu0
  %198 = vmatprep.mubr.f32.mxu0 0.0
  %v199 = vand.u32 %v55, 4294901760
  %v200 = vsub.f32 %v55, %v199
  %v201 = vand.u32 %v200, 4294901760
  %v202 = vsub.f32 %v200, %v201
  %v203 = vand.u32 %v202, 4294901760
  %204 = vmatmul.mubr.f32.gmra.mxu0 %v203
  %v205 = vpop.f32.mrf.mxu0
  %v206 = vadd.f32 0.0, %v205
  %v207 = vpop.f32.mrf.mxu0
  %208 = vmatprep.mubr.f32.mxu0 0.0
  %v209 = vand.u32 %v58, 4294901760
  %v210 = vsub.f32 %v58, %v209
  %v211 = vand.u32 %v210, 4294901760
  %v212 = vsub.f32 %v210, %v211
  %v213 = vand.u32 %v212, 4294901760
  %214 = vmatmul.mubr.f32.gmra.mxu0 %v213
  %v215 = vpop.f32.mrf.mxu0
  %v216 = vadd.f32 0.0, %v215
  %v217 = vpop.f32.mrf.mxu0
  %218 = vmatprep.mubr.f32.mxu0 0.0
  %v219 = vand.u32 %v61, 4294901760
  %v220 = vsub.f32 %v61, %v219
  %v221 = vand.u32 %v220, 4294901760
  %v222 = vsub.f32 %v220, %v221
  %v223 = vand.u32 %v222, 4294901760
  %224 = vmatmul.mubr.f32.gmra.mxu0 %v223
  %v225 = vpop.f32.mrf.mxu0
  %v226 = vadd.f32 0.0, %v225
  %v227 = vpop.f32.mrf.mxu0
  %228 = vmatprep.mubr.f32.mxu0 0.0
  %v229 = vand.u32 %v64, 4294901760
  %v230 = vsub.f32 %v64, %v229
  %v231 = vand.u32 %v230, 4294901760
  %v232 = vsub.f32 %v230, %v231
  %v233 = vand.u32 %v232, 4294901760
  %234 = vmatmul.mubr.f32.gmra.mxu0 %v233
  %v235 = vpop.f32.mrf.mxu0
  %v236 = vadd.f32 0.0, %v235
  %v237 = vpop.f32.mrf.mxu0
  %238 = vdwg.mxu0
  %239 = vmatprep.subr.mxu0 0.0
  %240 = vmatpush1.msra.mxu0 0.0
  %241 = vmatprep.subr.mxu0 0.0
  %242 = vmatpush1.msra.mxu0 0.0
  %243 = vmatprep.subr.mxu0 0.0
  %244 = vmatpush1.msra.mxu0 0.0
  %245 = vmatprep.subr.mxu0 0.0
  %246 = vmatpush1.msra.mxu0 0.0
  %247 = vmatprep.subr.mxu0 0.0
  %248 = vmatpush1.msra.mxu0 0.0
  %249 = vmatprep.subr.mxu0 0.0
  %250 = vmatpush1.msra.mxu0 0.0
  %251 = vmatprep.subr.mxu0 0.0
  %252 = vmatpush1.msra.mxu0 0.0
  %253 = vmatprep.subr.mxu0 0.0
  %254 = vmatpush1.msra.mxu0 0.0
  %255 = vmatprep.subr.mxu0 0.0
  %v256 = vand.u32 %v24, 4294901760
  %v257 = vsub.f32 %v24, %v256
  %v258 = vand.u32 %v257, 4294901760
  %v259 = vsub.f32 %v257, %v258
  %v260 = vand.u32 %v259, 4294901760
  %261 = vmatpush1.msra.mxu0 %v260
  %262 = vmatprep.subr.mxu0 0.0
  %v263 = vand.u32 %v23, 4294901760
  %v264 = vsub.f32 %v23, %v263
  %v265 = vand.u32 %v264, 4294901760
  %v266 = vsub.f32 %v264, %v265
  %v267 = vand.u32 %v266, 4294901760
  %268 = vmatpush1.msra.mxu0 %v267
  %269 = vmatprep.subr.mxu0 0.0
  %v270 = vand.u32 %v22, 4294901760
  %v271 = vsub.f32 %v22, %v270
  %v272 = vand.u32 %v271, 4294901760
  %v273 = vsub.f32 %v271, %v272
  %v274 = vand.u32 %v273, 4294901760
  %275 = vmatpush1.msra.mxu0 %v274
  %276 = vmatprep.subr.mxu0 0.0
  %v277 = vand.u32 %v21, 4294901760
  %v278 = vsub.f32 %v21, %v277
  %v279 = vand.u32 %v278, 4294901760
  %v280 = vsub.f32 %v278, %v279
  %v281 = vand.u32 %v280, 4294901760
  %282 = vmatpush1.msra.mxu0 %v281
  %283 = vmatprep.subr.mxu0 0.0
  %v284 = vand.u32 %v20, 4294901760
  %v285 = vsub.f32 %v20, %v284
  %v286 = vand.u32 %v285, 4294901760
  %v287 = vsub.f32 %v285, %v286
  %v288 = vand.u32 %v287, 4294901760
  %289 = vmatpush1.msra.mxu0 %v288
  %290 = vmatprep.subr.mxu0 0.0
  %v291 = vand.u32 %v19, 4294901760
  %v292 = vsub.f32 %v19, %v291
  %v293 = vand.u32 %v292, 4294901760
  %v294 = vsub.f32 %v292, %v293
  %v295 = vand.u32 %v294, 4294901760
  %296 = vmatpush1.msra.mxu0 %v295
  %297 = vmatprep.subr.mxu0 0.0
  %v298 = vand.u32 %v18, 4294901760
  %v299 = vsub.f32 %v18, %v298
  %v300 = vand.u32 %v299, 4294901760
  %v301 = vsub.f32 %v299, %v300
  %v302 = vand.u32 %v301, 4294901760
  %303 = vmatpush1.msra.mxu0 %v302
  %304 = vmatprep.subr.mxu0 0.0
  %v305 = vand.u32 %v17, 4294901760
  %v306 = vsub.f32 %v17, %v305
  %v307 = vand.u32 %v306, 4294901760
  %v308 = vsub.f32 %v306, %v307
  %v309 = vand.u32 %v308, 4294901760
  %310 = vmatpush1.msra.mxu0 %v309
  %311 = vmatprep.subr.mxu0 0.0
  %312 = vmatpush2.msra.mxu0 0.0
  %313 = vmatprep.subr.mxu0 0.0
  %314 = vmatpush2.msra.mxu0 0.0
  %315 = vmatprep.subr.mxu0 0.0
  %316 = vmatpush2.msra.mxu0 0.0
  %317 = vmatprep.subr.mxu0 0.0
  %318 = vmatpush2.msra.mxu0 0.0
  %319 = vmatprep.subr.mxu0 0.0
  %320 = vmatpush2.msra.mxu0 0.0
  %321 = vmatprep.subr.mxu0 0.0
  %322 = vmatpush2.msra.mxu0 0.0
  %323 = vmatprep.subr.mxu0 0.0
  %324 = vmatpush2.msra.mxu0 0.0
  %325 = vmatprep.subr.mxu0 0.0
  %326 = vmatpush2.msra.mxu0 0.0
  %327 = vmatprep.subr.mxu0 0.0
  %328 = vmatpush2.msra.mxu0 0.0
  %329 = vmatprep.subr.mxu0 0.0
  %330 = vmatpush2.msra.mxu0 0.0
  %331 = vmatprep.subr.mxu0 0.0
  %332 = vmatpush2.msra.mxu0 0.0
  %333 = vmatprep.subr.mxu0 0.0
  %334 = vmatpush2.msra.mxu0 0.0
  %335 = vmatprep.subr.mxu0 0.0
  %336 = vmatpush2.msra.mxu0 0.0
  %337 = vmatprep.subr.mxu0 0.0
  %338 = vmatpush2.msra.mxu0 0.0
  %339 = vmatprep.subr.mxu0 0.0
  %340 = vmatpush2.msra.mxu0 0.0
  %341 = vmatprep.subr.mxu0 0.0
  %342 = vmatpush2.msra.mxu0 0.0
  %343 = vmatprep.mubr.f32.mxu0 0.0
  %v344 = vand.u32 %v37, 4294901760
  %345 = vmatmul.mubr.f32.gmra.mxu0 %v344
  %v346 = vpop.f32.mrf.mxu0
  %v347 = vadd.f32 %v146, %v346
  %v348 = vpop.f32.mrf.mxu0
  %349 = vmatprep.mubr.f32.mxu0 0.0
  %v350 = vand.u32 %v40, 4294901760
  %351 = vmatmul.mubr.f32.gmra.mxu0 %v350
  %v352 = vpop.f32.mrf.mxu0
  %v353 = vadd.f32 %v156, %v352
  %v354 = vpop.f32.mrf.mxu0
  %355 = vmatprep.mubr.f32.mxu0 0.0
  %v356 = vand.u32 %v43, 4294901760
  %357 = vmatmul.mubr.f32.gmra.mxu0 %v356
  %v358 = vpop.f32.mrf.mxu0
  %v359 = vadd.f32 %v166, %v358
  %v360 = vpop.f32.mrf.mxu0
  %361 = vmatprep.mubr.f32.mxu0 0.0
  %v362 = vand.u32 %v46, 4294901760
  %363 = vmatmul.mubr.f32.gmra.mxu0 %v362
  %v364 = vpop.f32.mrf.mxu0
  %v365 = vadd.f32 %v176, %v364
  %v366 = vpop.f32.mrf.mxu0
  %367 = vmatprep.mubr.f32.mxu0 0.0
  %v368 = vand.u32 %v49, 4294901760
  %369 = vmatmul.mubr.f32.gmra.mxu0 %v368
  %v370 = vpop.f32.mrf.mxu0
  %v371 = vadd.f32 %v186, %v370
  %v372 = vpop.f32.mrf.mxu0
  %373 = vmatprep.mubr.f32.mxu0 0.0
  %v374 = vand.u32 %v52, 4294901760
  %375 = vmatmul.mubr.f32.gmra.mxu0 %v374
  %v376 = vpop.f32.mrf.mxu0
  %v377 = vadd.f32 %v196, %v376
  %v378 = vpop.f32.mrf.mxu0
  %379 = vmatprep.mubr.f32.mxu0 0.0
  %v380 = vand.u32 %v55, 4294901760
  %381 = vmatmul.mubr.f32.gmra.mxu0 %v380
  %v382 = vpop.f32.mrf.mxu0
  %v383 = vadd.f32 %v206, %v382
  %v384 = vpop.f32.mrf.mxu0
  %385 = vmatprep.mubr.f32.mxu0 0.0
  %v386 = vand.u32 %v58, 4294901760
  %387 = vmatmul.mubr.f32.gmra.mxu0 %v386
  %v388 = vpop.f32.mrf.mxu0
  %v389 = vadd.f32 %v216, %v388
  %v390 = vpop.f32.mrf.mxu0
  %391 = vmatprep.mubr.f32.mxu0 0.0
  %v392 = vand.u32 %v61, 4294901760
  %393 = vmatmul.mubr.f32.gmra.mxu0 %v392
  %v394 = vpop.f32.mrf.mxu0
  %v395 = vadd.f32 %v226, %v394
  %v396 = vpop.f32.mrf.mxu0
  %397 = vmatprep.mubr.f32.mxu0 0.0
  %v398 = vand.u32 %v64, 4294901760
  %399 = vmatmul.mubr.f32.gmra.mxu0 %v398
  %v400 = vpop.f32.mrf.mxu0
  %v401 = vadd.f32 %v236, %v400
  %v402 = vpop.f32.mrf.mxu0
  %403 = vdwg.mxu0
  %404 = vmatprep.subr.mxu0 0.0
  %405 = vmatpush1.msra.mxu0 0.0
  %406 = vmatprep.subr.mxu0 0.0
  %407 = vmatpush1.msra.mxu0 0.0
  %408 = vmatprep.subr.mxu0 0.0
  %409 = vmatpush1.msra.mxu0 0.0
  %410 = vmatprep.subr.mxu0 0.0
  %411 = vmatpush1.msra.mxu0 0.0
  %412 = vmatprep.subr.mxu0 0.0
  %413 = vmatpush1.msra.mxu0 0.0
  %414 = vmatprep.subr.mxu0 0.0
  %415 = vmatpush1.msra.mxu0 0.0
  %416 = vmatprep.subr.mxu0 0.0
  %417 = vmatpush1.msra.mxu0 0.0
  %418 = vmatprep.subr.mxu0 0.0
  %419 = vmatpush1.msra.mxu0 0.0
  %420 = vmatprep.subr.mxu0 0.0
  %v421 = vand.u32 %v24, 4294901760
  %v422 = vsub.f32 %v24, %v421
  %423 = vmatpush1.msra.mxu0 %v422
  %424 = vmatprep.subr.mxu0 0.0
  %v425 = vand.u32 %v23, 4294901760
  %v426 = vsub.f32 %v23, %v425
  %427 = vmatpush1.msra.mxu0 %v426
  %428 = vmatprep.subr.mxu0 0.0
  %v429 = vand.u32 %v22, 4294901760
  %v430 = vsub.f32 %v22, %v429
  %431 = vmatpush1.msra.mxu0 %v430
  %432 = vmatprep.subr.mxu0 0.0
  %v433 = vand.u32 %v21, 4294901760
  %v434 = vsub.f32 %v21, %v433
  %435 = vmatpush1.msra.mxu0 %v434
  %436 = vmatprep.subr.mxu0 0.0
  %v437 = vand.u32 %v20, 4294901760
  %v438 = vsub.f32 %v20, %v437
  %439 = vmatpush1.msra.mxu0 %v438
  %440 = vmatprep.subr.mxu0 0.0
  %v441 = vand.u32 %v19, 4294901760
  %v442 = vsub.f32 %v19, %v441
  %443 = vmatpush1.msra.mxu0 %v442
  %444 = vmatprep.subr.mxu0 0.0
  %v445 = vand.u32 %v18, 4294901760
  %v446 = vsub.f32 %v18, %v445
  %447 = vmatpush1.msra.mxu0 %v446
  %448 = vmatprep.subr.mxu0 0.0
  %v449 = vand.u32 %v17, 4294901760
  %v450 = vsub.f32 %v17, %v449
  %451 = vmatpush1.msra.mxu0 %v450
  %452 = vmatprep.subr.mxu0 0.0
  %453 = vmatpush2.msra.mxu0 0.0
  %454 = vmatprep.subr.mxu0 0.0
  %455 = vmatpush2.msra.mxu0 0.0
  %456 = vmatprep.subr.mxu0 0.0
  %457 = vmatpush2.msra.mxu0 0.0
  %458 = vmatprep.subr.mxu0 0.0
  %459 = vmatpush2.msra.mxu0 0.0
  %460 = vmatprep.subr.mxu0 0.0
  %461 = vmatpush2.msra.mxu0 0.0
  %462 = vmatprep.subr.mxu0 0.0
  %463 = vmatpush2.msra.mxu0 0.0
  %464 = vmatprep.subr.mxu0 0.0
  %465 = vmatpush2.msra.mxu0 0.0
  %466 = vmatprep.subr.mxu0 0.0
  %467 = vmatpush2.msra.mxu0 0.0
  %468 = vmatprep.subr.mxu0 0.0
  %469 = vmatpush2.msra.mxu0 0.0
  %470 = vmatprep.subr.mxu0 0.0
  %471 = vmatpush2.msra.mxu0 0.0
  %472 = vmatprep.subr.mxu0 0.0
  %473 = vmatpush2.msra.mxu0 0.0
  %474 = vmatprep.subr.mxu0 0.0
  %475 = vmatpush2.msra.mxu0 0.0
  %476 = vmatprep.subr.mxu0 0.0
  %477 = vmatpush2.msra.mxu0 0.0
  %478 = vmatprep.subr.mxu0 0.0
  %479 = vmatpush2.msra.mxu0 0.0
  %480 = vmatprep.subr.mxu0 0.0
  %481 = vmatpush2.msra.mxu0 0.0
  %482 = vmatprep.subr.mxu0 0.0
  %483 = vmatpush2.msra.mxu0 0.0
  %484 = vmatprep.mubr.f32.mxu0 0.0
  %v485 = vand.u32 %v37, 4294901760
  %v486 = vsub.f32 %v37, %v485
  %487 = vmatmul.mubr.f32.gmra.mxu0 %v486
  %v488 = vpop.f32.mrf.mxu0
  %v489 = vadd.f32 %v347, %v488
  %v490 = vpop.f32.mrf.mxu0
  %491 = vmatprep.mubr.f32.mxu0 0.0
  %v492 = vand.u32 %v40, 4294901760
  %v493 = vsub.f32 %v40, %v492
  %494 = vmatmul.mubr.f32.gmra.mxu0 %v493
  %v495 = vpop.f32.mrf.mxu0
  %v496 = vadd.f32 %v353, %v495
  %v497 = vpop.f32.mrf.mxu0
  %498 = vmatprep.mubr.f32.mxu0 0.0
  %v499 = vand.u32 %v43, 4294901760
  %v500 = vsub.f32 %v43, %v499
  %501 = vmatmul.mubr.f32.gmra.mxu0 %v500
  %v502 = vpop.f32.mrf.mxu0
  %v503 = vadd.f32 %v359, %v502
  %v504 = vpop.f32.mrf.mxu0
  %505 = vmatprep.mubr.f32.mxu0 0.0
  %v506 = vand.u32 %v46, 4294901760
  %v507 = vsub.f32 %v46, %v506
  %508 = vmatmul.mubr.f32.gmra.mxu0 %v507
  %v509 = vpop.f32.mrf.mxu0
  %v510 = vadd.f32 %v365, %v509
  %v511 = vpop.f32.mrf.mxu0
  %512 = vmatprep.mubr.f32.mxu0 0.0
  %v513 = vand.u32 %v49, 4294901760
  %v514 = vsub.f32 %v49, %v513
  %515 = vmatmul.mubr.f32.gmra.mxu0 %v514
  %v516 = vpop.f32.mrf.mxu0
  %v517 = vadd.f32 %v371, %v516
  %v518 = vpop.f32.mrf.mxu0
  %519 = vmatprep.mubr.f32.mxu0 0.0
  %v520 = vand.u32 %v52, 4294901760
  %v521 = vsub.f32 %v52, %v520
  %522 = vmatmul.mubr.f32.gmra.mxu0 %v521
  %v523 = vpop.f32.mrf.mxu0
  %v524 = vadd.f32 %v377, %v523
  %v525 = vpop.f32.mrf.mxu0
  %526 = vmatprep.mubr.f32.mxu0 0.0
  %v527 = vand.u32 %v55, 4294901760
  %v528 = vsub.f32 %v55, %v527
  %529 = vmatmul.mubr.f32.gmra.mxu0 %v528
  %v530 = vpop.f32.mrf.mxu0
  %v531 = vadd.f32 %v383, %v530
  %v532 = vpop.f32.mrf.mxu0
  %533 = vmatprep.mubr.f32.mxu0 0.0
  %v534 = vand.u32 %v58, 4294901760
  %v535 = vsub.f32 %v58, %v534
  %536 = vmatmul.mubr.f32.gmra.mxu0 %v535
  %v537 = vpop.f32.mrf.mxu0
  %v538 = vadd.f32 %v389, %v537
  %v539 = vpop.f32.mrf.mxu0
  %540 = vmatprep.mubr.f32.mxu0 0.0
  %v541 = vand.u32 %v61, 4294901760
  %v542 = vsub.f32 %v61, %v541
  %543 = vmatmul.mubr.f32.gmra.mxu0 %v542
  %v544 = vpop.f32.mrf.mxu0
  %v545 = vadd.f32 %v395, %v544
  %v546 = vpop.f32.mrf.mxu0
  %547 = vmatprep.mubr.f32.mxu0 0.0
  %v548 = vand.u32 %v64, 4294901760
  %v549 = vsub.f32 %v64, %v548
  %550 = vmatmul.mubr.f32.gmra.mxu0 %v549
  %v551 = vpop.f32.mrf.mxu0
  %v552 = vadd.f32 %v401, %v551
  %v553 = vpop.f32.mrf.mxu0
  %554 = vdwg.mxu0
  %555 = vmatprep.subr.mxu0 0.0
  %556 = vmatpush1.msra.mxu0 0.0
  %557 = vmatprep.subr.mxu0 0.0
  %558 = vmatpush1.msra.mxu0 0.0
  %559 = vmatprep.subr.mxu0 0.0
  %560 = vmatpush1.msra.mxu0 0.0
  %561 = vmatprep.subr.mxu0 0.0
  %562 = vmatpush1.msra.mxu0 0.0
  %563 = vmatprep.subr.mxu0 0.0
  %564 = vmatpush1.msra.mxu0 0.0
  %565 = vmatprep.subr.mxu0 0.0
  %566 = vmatpush1.msra.mxu0 0.0
  %567 = vmatprep.subr.mxu0 0.0
  %568 = vmatpush1.msra.mxu0 0.0
  %569 = vmatprep.subr.mxu0 0.0
  %570 = vmatpush1.msra.mxu0 0.0
  %571 = vmatprep.subr.mxu0 0.0
  %v572 = vand.u32 %v24, 4294901760
  %573 = vmatpush1.msra.mxu0 %v572
  %574 = vmatprep.subr.mxu0 0.0
  %v575 = vand.u32 %v23, 4294901760
  %576 = vmatpush1.msra.mxu0 %v575
  %577 = vmatprep.subr.mxu0 0.0
  %v578 = vand.u32 %v22, 4294901760
  %579 = vmatpush1.msra.mxu0 %v578
  %580 = vmatprep.subr.mxu0 0.0
  %v581 = vand.u32 %v21, 4294901760
  %582 = vmatpush1.msra.mxu0 %v581
  %583 = vmatprep.subr.mxu0 0.0
  %v584 = vand.u32 %v20, 4294901760
  %585 = vmatpush1.msra.mxu0 %v584
  %586 = vmatprep.subr.mxu0 0.0
  %v587 = vand.u32 %v19, 4294901760
  %588 = vmatpush1.msra.mxu0 %v587
  %589 = vmatprep.subr.mxu0 0.0
  %v590 = vand.u32 %v18, 4294901760
  %591 = vmatpush1.msra.mxu0 %v590
  %592 = vmatprep.subr.mxu0 0.0
  %v593 = vand.u32 %v17, 4294901760
  %594 = vmatpush1.msra.mxu0 %v593
  %595 = vmatprep.subr.mxu0 0.0
  %596 = vmatpush2.msra.mxu0 0.0
  %597 = vmatprep.subr.mxu0 0.0
  %598 = vmatpush2.msra.mxu0 0.0
  %599 = vmatprep.subr.mxu0 0.0
  %600 = vmatpush2.msra.mxu0 0.0
  %601 = vmatprep.subr.mxu0 0.0
  %602 = vmatpush2.msra.mxu0 0.0
  %603 = vmatprep.subr.mxu0 0.0
  %604 = vmatpush2.msra.mxu0 0.0
  %605 = vmatprep.subr.mxu0 0.0
  %606 = vmatpush2.msra.mxu0 0.0
  %607 = vmatprep.subr.mxu0 0.0
  %608 = vmatpush2.msra.mxu0 0.0
  %609 = vmatprep.subr.mxu0 0.0
  %610 = vmatpush2.msra.mxu0 0.0
  %611 = vmatprep.subr.mxu0 0.0
  %612 = vmatpush2.msra.mxu0 0.0
  %613 = vmatprep.subr.mxu0 0.0
  %614 = vmatpush2.msra.mxu0 0.0
  %615 = vmatprep.subr.mxu0 0.0
  %616 = vmatpush2.msra.mxu0 0.0
  %617 = vmatprep.subr.mxu0 0.0
  %618 = vmatpush2.msra.mxu0 0.0
  %619 = vmatprep.subr.mxu0 0.0
  %620 = vmatpush2.msra.mxu0 0.0
  %621 = vmatprep.subr.mxu0 0.0
  %622 = vmatpush2.msra.mxu0 0.0
  %623 = vmatprep.subr.mxu0 0.0
  %624 = vmatpush2.msra.mxu0 0.0
  %625 = vmatprep.subr.mxu0 0.0
  %626 = vmatpush2.msra.mxu0 0.0
  %627 = vmatprep.mubr.f32.mxu0 0.0
  %v628 = vand.u32 %v37, 4294901760
  %v629 = vsub.f32 %v37, %v628
  %v630 = vand.u32 %v629, 4294901760
  %631 = vmatmul.mubr.f32.gmra.mxu0 %v630
  %v632 = vpop.f32.mrf.mxu0
  %v633 = vadd.f32 %v489, %v632
  %v634 = vpop.f32.mrf.mxu0
  %635 = vmatprep.mubr.f32.mxu0 0.0
  %v636 = vand.u32 %v40, 4294901760
  %v637 = vsub.f32 %v40, %v636
  %v638 = vand.u32 %v637, 4294901760
  %639 = vmatmul.mubr.f32.gmra.mxu0 %v638
  %v640 = vpop.f32.mrf.mxu0
  %v641 = vadd.f32 %v496, %v640
  %v642 = vpop.f32.mrf.mxu0
  %643 = vmatprep.mubr.f32.mxu0 0.0
  %v644 = vand.u32 %v43, 4294901760
  %v645 = vsub.f32 %v43, %v644
  %v646 = vand.u32 %v645, 4294901760
  %647 = vmatmul.mubr.f32.gmra.mxu0 %v646
  %v648 = vpop.f32.mrf.mxu0
  %v649 = vadd.f32 %v503, %v648
  %v650 = vpop.f32.mrf.mxu0
  %651 = vmatprep.mubr.f32.mxu0 0.0
  %v652 = vand.u32 %v46, 4294901760
  %v653 = vsub.f32 %v46, %v652
  %v654 = vand.u32 %v653, 4294901760
  %655 = vmatmul.mubr.f32.gmra.mxu0 %v654
  %v656 = vpop.f32.mrf.mxu0
  %v657 = vadd.f32 %v510, %v656
  %v658 = vpop.f32.mrf.mxu0
  %659 = vmatprep.mubr.f32.mxu0 0.0
  %v660 = vand.u32 %v49, 4294901760
  %v661 = vsub.f32 %v49, %v660
  %v662 = vand.u32 %v661, 4294901760
  %663 = vmatmul.mubr.f32.gmra.mxu0 %v662
  %v664 = vpop.f32.mrf.mxu0
  %v665 = vadd.f32 %v517, %v664
  %v666 = vpop.f32.mrf.mxu0
  %667 = vmatprep.mubr.f32.mxu0 0.0
  %v668 = vand.u32 %v52, 4294901760
  %v669 = vsub.f32 %v52, %v668
  %v670 = vand.u32 %v669, 4294901760
  %671 = vmatmul.mubr.f32.gmra.mxu0 %v670
  %v672 = vpop.f32.mrf.mxu0
  %v673 = vadd.f32 %v524, %v672
  %v674 = vpop.f32.mrf.mxu0
  %675 = vmatprep.mubr.f32.mxu0 0.0
  %v676 = vand.u32 %v55, 4294901760
  %v677 = vsub.f32 %v55, %v676
  %v678 = vand.u32 %v677, 4294901760
  %679 = vmatmul.mubr.f32.gmra.mxu0 %v678
  %v680 = vpop.f32.mrf.mxu0
  %v681 = vadd.f32 %v531, %v680
  %v682 = vpop.f32.mrf.mxu0
  %683 = vmatprep.mubr.f32.mxu0 0.0
  %v684 = vand.u32 %v58, 4294901760
  %v685 = vsub.f32 %v58, %v684
  %v686 = vand.u32 %v685, 4294901760
  %687 = vmatmul.mubr.f32.gmra.mxu0 %v686
  %v688 = vpop.f32.mrf.mxu0
  %v689 = vadd.f32 %v538, %v688
  %v690 = vpop.f32.mrf.mxu0
  %691 = vmatprep.mubr.f32.mxu0 0.0
  %v692 = vand.u32 %v61, 4294901760
  %v693 = vsub.f32 %v61, %v692
  %v694 = vand.u32 %v693, 4294901760
  %695 = vmatmul.mubr.f32.gmra.mxu0 %v694
  %v696 = vpop.f32.mrf.mxu0
  %v697 = vadd.f32 %v545, %v696
  %v698 = vpop.f32.mrf.mxu0
  %699 = vmatprep.mubr.f32.mxu0 0.0
  %v700 = vand.u32 %v64, 4294901760
  %v701 = vsub.f32 %v64, %v700
  %v702 = vand.u32 %v701, 4294901760
  %703 = vmatmul.mubr.f32.gmra.mxu0 %v702
  %v704 = vpop.f32.mrf.mxu0
  %v705 = vadd.f32 %v552, %v704
  %v706 = vpop.f32.mrf.mxu0
  %707 = vdwg.mxu0
  %708 = vmatprep.subr.mxu0 0.0
  %709 = vmatpush1.msra.mxu0 0.0
  %710 = vmatprep.subr.mxu0 0.0
  %711 = vmatpush1.msra.mxu0 0.0
  %712 = vmatprep.subr.mxu0 0.0
  %713 = vmatpush1.msra.mxu0 0.0
  %714 = vmatprep.subr.mxu0 0.0
  %715 = vmatpush1.msra.mxu0 0.0
  %716 = vmatprep.subr.mxu0 0.0
  %717 = vmatpush1.msra.mxu0 0.0
  %718 = vmatprep.subr.mxu0 0.0
  %719 = vmatpush1.msra.mxu0 0.0
  %720 = vmatprep.subr.mxu0 0.0
  %721 = vmatpush1.msra.mxu0 0.0
  %722 = vmatprep.subr.mxu0 0.0
  %723 = vmatpush1.msra.mxu0 0.0
  %724 = vmatprep.subr.mxu0 0.0
  %v725 = vand.u32 %v24, 4294901760
  %v726 = vsub.f32 %v24, %v725
  %v727 = vand.u32 %v726, 4294901760
  %728 = vmatpush1.msra.mxu0 %v727
  %729 = vmatprep.subr.mxu0 0.0
  %v730 = vand.u32 %v23, 4294901760
  %v731 = vsub.f32 %v23, %v730
  %v732 = vand.u32 %v731, 4294901760
  %733 = vmatpush1.msra.mxu0 %v732
  %734 = vmatprep.subr.mxu0 0.0
  %v735 = vand.u32 %v22, 4294901760
  %v736 = vsub.f32 %v22, %v735
  %v737 = vand.u32 %v736, 4294901760
  %738 = vmatpush1.msra.mxu0 %v737
  %739 = vmatprep.subr.mxu0 0.0
  %v740 = vand.u32 %v21, 4294901760
  %v741 = vsub.f32 %v21, %v740
  %v742 = vand.u32 %v741, 4294901760
  %743 = vmatpush1.msra.mxu0 %v742
  %744 = vmatprep.subr.mxu0 0.0
  %v745 = vand.u32 %v20, 4294901760
  %v746 = vsub.f32 %v20, %v745
  %v747 = vand.u32 %v746, 4294901760
  %748 = vmatpush1.msra.mxu0 %v747
  %749 = vmatprep.subr.mxu0 0.0
  %v750 = vand.u32 %v19, 4294901760
  %v751 = vsub.f32 %v19, %v750
  %v752 = vand.u32 %v751, 4294901760
  %753 = vmatpush1.msra.mxu0 %v752
  %754 = vmatprep.subr.mxu0 0.0
  %v755 = vand.u32 %v18, 4294901760
  %v756 = vsub.f32 %v18, %v755
  %v757 = vand.u32 %v756, 4294901760
  %758 = vmatpush1.msra.mxu0 %v757
  %759 = vmatprep.subr.mxu0 0.0
  %v760 = vand.u32 %v17, 4294901760
  %v761 = vsub.f32 %v17, %v760
  %v762 = vand.u32 %v761, 4294901760
  %763 = vmatpush1.msra.mxu0 %v762
  %764 = vmatprep.subr.mxu0 0.0
  %765 = vmatpush2.msra.mxu0 0.0
  %766 = vmatprep.subr.mxu0 0.0
  %767 = vmatpush2.msra.mxu0 0.0
  %768 = vmatprep.subr.mxu0 0.0
  %769 = vmatpush2.msra.mxu0 0.0
  %770 = vmatprep.subr.mxu0 0.0
  %771 = vmatpush2.msra.mxu0 0.0
  %772 = vmatprep.subr.mxu0 0.0
  %773 = vmatpush2.msra.mxu0 0.0
  %774 = vmatprep.subr.mxu0 0.0
  %775 = vmatpush2.msra.mxu0 0.0
  %776 = vmatprep.subr.mxu0 0.0
  %777 = vmatpush2.msra.mxu0 0.0
  %778 = vmatprep.subr.mxu0 0.0
  %779 = vmatpush2.msra.mxu0 0.0
  %780 = vmatprep.subr.mxu0 0.0
  %781 = vmatpush2.msra.mxu0 0.0
  %782 = vmatprep.subr.mxu0 0.0
  %783 = vmatpush2.msra.mxu0 0.0
  %784 = vmatprep.subr.mxu0 0.0
  %785 = vmatpush2.msra.mxu0 0.0
  %786 = vmatprep.subr.mxu0 0.0
  %787 = vmatpush2.msra.mxu0 0.0
  %788 = vmatprep.subr.mxu0 0.0
  %789 = vmatpush2.msra.mxu0 0.0
  %790 = vmatprep.subr.mxu0 0.0
  %791 = vmatpush2.msra.mxu0 0.0
  %792 = vmatprep.subr.mxu0 0.0
  %793 = vmatpush2.msra.mxu0 0.0
  %794 = vmatprep.subr.mxu0 0.0
  %795 = vmatpush2.msra.mxu0 0.0
  %796 = vmatprep.mubr.f32.mxu0 0.0
  %v797 = vand.u32 %v37, 4294901760
  %798 = vmatmul.mubr.f32.gmra.mxu0 %v797
  %v799 = vpop.f32.mrf.mxu0
  %v800 = vadd.f32 %v633, %v799
  %v801 = vpop.f32.mrf.mxu0
  %802 = vmatprep.mubr.f32.mxu0 0.0
  %v803 = vand.u32 %v40, 4294901760
  %804 = vmatmul.mubr.f32.gmra.mxu0 %v803
  %v805 = vpop.f32.mrf.mxu0
  %v806 = vadd.f32 %v641, %v805
  %v807 = vpop.f32.mrf.mxu0
  %808 = vmatprep.mubr.f32.mxu0 0.0
  %v809 = vand.u32 %v43, 4294901760
  %810 = vmatmul.mubr.f32.gmra.mxu0 %v809
  %v811 = vpop.f32.mrf.mxu0
  %v812 = vadd.f32 %v649, %v811
  %v813 = vpop.f32.mrf.mxu0
  %814 = vmatprep.mubr.f32.mxu0 0.0
  %v815 = vand.u32 %v46, 4294901760
  %816 = vmatmul.mubr.f32.gmra.mxu0 %v815
  %v817 = vpop.f32.mrf.mxu0
  %v818 = vadd.f32 %v657, %v817
  %v819 = vpop.f32.mrf.mxu0
  %820 = vmatprep.mubr.f32.mxu0 0.0
  %v821 = vand.u32 %v49, 4294901760
  %822 = vmatmul.mubr.f32.gmra.mxu0 %v821
  %v823 = vpop.f32.mrf.mxu0
  %v824 = vadd.f32 %v665, %v823
  %v825 = vpop.f32.mrf.mxu0
  %826 = vmatprep.mubr.f32.mxu0 0.0
  %v827 = vand.u32 %v52, 4294901760
  %828 = vmatmul.mubr.f32.gmra.mxu0 %v827
  %v829 = vpop.f32.mrf.mxu0
  %v830 = vadd.f32 %v673, %v829
  %v831 = vpop.f32.mrf.mxu0
  %832 = vmatprep.mubr.f32.mxu0 0.0
  %v833 = vand.u32 %v55, 4294901760
  %834 = vmatmul.mubr.f32.gmra.mxu0 %v833
  %v835 = vpop.f32.mrf.mxu0
  %v836 = vadd.f32 %v681, %v835
  %v837 = vpop.f32.mrf.mxu0
  %838 = vmatprep.mubr.f32.mxu0 0.0
  %v839 = vand.u32 %v58, 4294901760
  %840 = vmatmul.mubr.f32.gmra.mxu0 %v839
  %v841 = vpop.f32.mrf.mxu0
  %v842 = vadd.f32 %v689, %v841
  %v843 = vpop.f32.mrf.mxu0
  %844 = vmatprep.mubr.f32.mxu0 0.0
  %v845 = vand.u32 %v61, 4294901760
  %846 = vmatmul.mubr.f32.gmra.mxu0 %v845
  %v847 = vpop.f32.mrf.mxu0
  %v848 = vadd.f32 %v697, %v847
  %v849 = vpop.f32.mrf.mxu0
  %850 = vmatprep.mubr.f32.mxu0 0.0
  %v851 = vand.u32 %v64, 4294901760
  %852 = vmatmul.mubr.f32.gmra.mxu0 %v851
  %v853 = vpop.f32.mrf.mxu0
  %v854 = vadd.f32 %v705, %v853
  %v855 = vpop.f32.mrf.mxu0
  %856 = vdwg.mxu0
  %857 = vmatprep.subr.mxu0 0.0
  %858 = vmatpush1.msra.mxu0 0.0
  %859 = vmatprep.subr.mxu0 0.0
  %860 = vmatpush1.msra.mxu0 0.0
  %861 = vmatprep.subr.mxu0 0.0
  %862 = vmatpush1.msra.mxu0 0.0
  %863 = vmatprep.subr.mxu0 0.0
  %864 = vmatpush1.msra.mxu0 0.0
  %865 = vmatprep.subr.mxu0 0.0
  %866 = vmatpush1.msra.mxu0 0.0
  %867 = vmatprep.subr.mxu0 0.0
  %868 = vmatpush1.msra.mxu0 0.0
  %869 = vmatprep.subr.mxu0 0.0
  %870 = vmatpush1.msra.mxu0 0.0
  %871 = vmatprep.subr.mxu0 0.0
  %872 = vmatpush1.msra.mxu0 0.0
  %873 = vmatprep.subr.mxu0 0.0
  %v874 = vand.u32 %v24, 4294901760
  %875 = vmatpush1.msra.mxu0 %v874
  %876 = vmatprep.subr.mxu0 0.0
  %v877 = vand.u32 %v23, 4294901760
  %878 = vmatpush1.msra.mxu0 %v877
  %879 = vmatprep.subr.mxu0 0.0
  %v880 = vand.u32 %v22, 4294901760
  %881 = vmatpush1.msra.mxu0 %v880
  %882 = vmatprep.subr.mxu0 0.0
  %v883 = vand.u32 %v21, 4294901760
  %884 = vmatpush1.msra.mxu0 %v883
  %885 = vmatprep.subr.mxu0 0.0
  %v886 = vand.u32 %v20, 4294901760
  %887 = vmatpush1.msra.mxu0 %v886
  %888 = vmatprep.subr.mxu0 0.0
  %v889 = vand.u32 %v19, 4294901760
  %890 = vmatpush1.msra.mxu0 %v889
  %891 = vmatprep.subr.mxu0 0.0
  %v892 = vand.u32 %v18, 4294901760
  %893 = vmatpush1.msra.mxu0 %v892
  %894 = vmatprep.subr.mxu0 0.0
  %v895 = vand.u32 %v17, 4294901760
  %896 = vmatpush1.msra.mxu0 %v895
  %897 = vmatprep.subr.mxu0 0.0
  %898 = vmatpush2.msra.mxu0 0.0
  %899 = vmatprep.subr.mxu0 0.0
  %900 = vmatpush2.msra.mxu0 0.0
  %901 = vmatprep.subr.mxu0 0.0
  %902 = vmatpush2.msra.mxu0 0.0
  %903 = vmatprep.subr.mxu0 0.0
  %904 = vmatpush2.msra.mxu0 0.0
  %905 = vmatprep.subr.mxu0 0.0
  %906 = vmatpush2.msra.mxu0 0.0
  %907 = vmatprep.subr.mxu0 0.0
  %908 = vmatpush2.msra.mxu0 0.0
  %909 = vmatprep.subr.mxu0 0.0
  %910 = vmatpush2.msra.mxu0 0.0
  %911 = vmatprep.subr.mxu0 0.0
  %912 = vmatpush2.msra.mxu0 0.0
  %913 = vmatprep.subr.mxu0 0.0
  %914 = vmatpush2.msra.mxu0 0.0
  %915 = vmatprep.subr.mxu0 0.0
  %916 = vmatpush2.msra.mxu0 0.0
  %917 = vmatprep.subr.mxu0 0.0
  %918 = vmatpush2.msra.mxu0 0.0
  %919 = vmatprep.subr.mxu0 0.0
  %920 = vmatpush2.msra.mxu0 0.0
  %921 = vmatprep.subr.mxu0 0.0
  %922 = vmatpush2.msra.mxu0 0.0
  %923 = vmatprep.subr.mxu0 0.0
  %924 = vmatpush2.msra.mxu0 0.0
  %925 = vmatprep.subr.mxu0 0.0
  %926 = vmatpush2.msra.mxu0 0.0
  %927 = vmatprep.subr.mxu0 0.0
  %928 = vmatpush2.msra.mxu0 0.0
  %929 = vmatprep.mubr.f32.mxu0 0.0
  %v930 = vand.u32 %v37, 4294901760
  %931 = vmatmul.mubr.f32.gmra.mxu0 %v930
  %v932 = vpop.f32.mrf.mxu0
  %v933 = vadd.f32 %v800, %v932
  %v934 = vpop.f32.mrf.mxu0
  %935 = vmatprep.mubr.f32.mxu0 0.0
  %v936 = vand.u32 %v40, 4294901760
  %937 = vmatmul.mubr.f32.gmra.mxu0 %v936
  %v938 = vpop.f32.mrf.mxu0
  %v939 = vadd.f32 %v806, %v938
  %v940 = vpop.f32.mrf.mxu0
  %941 = vmatprep.mubr.f32.mxu0 0.0
  %v942 = vand.u32 %v43, 4294901760
  %943 = vmatmul.mubr.f32.gmra.mxu0 %v942
  %v944 = vpop.f32.mrf.mxu0
  %v945 = vadd.f32 %v812, %v944
  %v946 = vpop.f32.mrf.mxu0
  %947 = vmatprep.mubr.f32.mxu0 0.0
  %v948 = vand.u32 %v46, 4294901760
  %949 = vmatmul.mubr.f32.gmra.mxu0 %v948
  %v950 = vpop.f32.mrf.mxu0
  %v951 = vadd.f32 %v818, %v950
  %v952 = vpop.f32.mrf.mxu0
  %953 = vmatprep.mubr.f32.mxu0 0.0
  %v954 = vand.u32 %v49, 4294901760
  %955 = vmatmul.mubr.f32.gmra.mxu0 %v954
  %v956 = vpop.f32.mrf.mxu0
  %v957 = vadd.f32 %v824, %v956
  %v958 = vpop.f32.mrf.mxu0
  %959 = vmatprep.mubr.f32.mxu0 0.0
  %v960 = vand.u32 %v52, 4294901760
  %961 = vmatmul.mubr.f32.gmra.mxu0 %v960
  %v962 = vpop.f32.mrf.mxu0
  %v963 = vadd.f32 %v830, %v962
  %v964 = vpop.f32.mrf.mxu0
  %965 = vmatprep.mubr.f32.mxu0 0.0
  %v966 = vand.u32 %v55, 4294901760
  %967 = vmatmul.mubr.f32.gmra.mxu0 %v966
  %v968 = vpop.f32.mrf.mxu0
  %v969 = vadd.f32 %v836, %v968
  %v970 = vpop.f32.mrf.mxu0
  %971 = vmatprep.mubr.f32.mxu0 0.0
  %v972 = vand.u32 %v58, 4294901760
  %973 = vmatmul.mubr.f32.gmra.mxu0 %v972
  %v974 = vpop.f32.mrf.mxu0
  %v975 = vadd.f32 %v842, %v974
  %v976 = vpop.f32.mrf.mxu0
  %977 = vmatprep.mubr.f32.mxu0 0.0
  %v978 = vand.u32 %v61, 4294901760
  %979 = vmatmul.mubr.f32.gmra.mxu0 %v978
  %v980 = vpop.f32.mrf.mxu0
  %v981 = vadd.f32 %v848, %v980
  %v982 = vpop.f32.mrf.mxu0
  %983 = vmatprep.mubr.f32.mxu0 0.0
  %v984 = vand.u32 %v64, 4294901760
  %985 = vmatmul.mubr.f32.gmra.mxu0 %v984
  %v986 = vpop.f32.mrf.mxu0
  %v987 = vadd.f32 %v854, %v986
  %v988 = vpop.f32.mrf.mxu0
  %989 = vdwg.mxu0
  %v990 = vld [vmem:[%s3] sm:$0xff]
  %v991 = vld [vmem:[%s3 + $0x8] sm:$0xff]
  %v992 = vld [vmem:[%s3 + $0x10] sm:$0xff]
  %v993 = vld [vmem:[%s3 + $0x18] sm:$0xff]
  %v994 = vld [vmem:[%s3 + $0x20] sm:$0xff]
  %v995 = vld [vmem:[%s3 + $0x28] sm:$0xff]
  %v996 = vld [vmem:[%s3 + $0x30] sm:$0xff]
  %v997 = vld [vmem:[%s3 + $0x38] sm:$0xff]
  %v998 = vld [vmem:[%s3 + $0x40] sm:$0xff]
  %v999 = vld [vmem:[%s3 + $0x48] sm:$0xff]
  %v1000 = vmul.f32 %v933, %v990
  %v1001 = vmul.f32 %v939, %v991
  %v1002 = vmul.f32 %v945, %v992
  %v1003 = vmul.f32 %v951, %v993
  %v1004 = vmul.f32 %v957, %v994
  %v1005 = vmul.f32 %v963, %v995
  %v1006 = vmul.f32 %v969, %v996
  %v1007 = vmul.f32 %v975, %v997
  %v1008 = vmul.f32 %v981, %v998
  %v1009 = vmul.f32 %v987, %v999
  %s1010 = scalar_lea.vmem %s3, 80
  %v1011 = vld [vmem:[%s1010] sm:$0xff]
  %v1012 = vld [vmem:[%s1010 + $0x8] sm:$0xff]
  %v1013 = vld [vmem:[%s1010 + $0x10] sm:$0xff]
  %v1014 = vld [vmem:[%s1010 + $0x18] sm:$0xff]
  %v1015 = vld [vmem:[%s1010 + $0x20] sm:$0xff]
  %v1016 = vld [vmem:[%s1010 + $0x28] sm:$0xff]
  %v1017 = vld [vmem:[%s1010 + $0x30] sm:$0xff]
  %v1018 = vld [vmem:[%s1010 + $0x38] sm:$0xff]
  %v1019 = vld [vmem:[%s1010 + $0x40] sm:$0xff]
  %v1020 = vld [vmem:[%s1010 + $0x48] sm:$0xff]
  %v1021 = vmul.f32 %v963, %v1011
  %v1022 = vmul.f32 %v969, %v1012
  %v1023 = vmul.f32 %v975, %v1013
  %v1024 = vmul.f32 %v981, %v1014
  %v1025 = vmul.f32 %v987, %v1015
  %v1026 = vmul.f32 %v933, %v1016
  %v1027 = vmul.f32 %v939, %v1017
  %v1028 = vmul.f32 %v945, %v1018
  %v1029 = vmul.f32 %v951, %v1019
  %v1030 = vmul.f32 %v957, %v1020
  %v1031 = vadd.f32 %v1000, %v1021
  %v1032 = vadd.f32 %v1001, %v1022
  %v1033 = vadd.f32 %v1002, %v1023
  %v1034 = vadd.f32 %v1003, %v1024
  %v1035 = vadd.f32 %v1004, %v1025
  %v1036 = vadd.f32 %v1005, %v1026
  %v1037 = vadd.f32 %v1006, %v1027
  %v1038 = vadd.f32 %v1007, %v1028
  %v1039 = vadd.f32 %v1008, %v1029
  %v1040 = vadd.f32 %v1009, %v1030
  %v1041 = vld [vmem:[%s2] sm:$0xff]
  %v1042 = vld [vmem:[%s2 + $0x8] sm:$0xff]
  %v1043 = vld [vmem:[%s2 + $0x10] sm:$0xff]
  %v1044 = vld [vmem:[%s2 + $0x18] sm:$0xff]
  %v1045 = vld [vmem:[%s2 + $0x20] sm:$0xff]
  %v1046 = vld [vmem:[%s2 + $0x28] sm:$0xff]
  %v1047 = vld [vmem:[%s2 + $0x30] sm:$0xff]
  %v1048 = vld [vmem:[%s2 + $0x38] sm:$0xff]
  %vm1049 = vcmask 654336
  %v1051 = vsel %vm1049, %v1041, 0
  %v1054 = vsel %vm1049, %v1042, 0
  %v1057 = vsel %vm1049, %v1043, 0
  %v1060 = vsel %vm1049, %v1044, 0
  %v1063 = vsel %vm1049, %v1045, 0
  %v1066 = vsel %vm1049, %v1046, 0
  %v1069 = vsel %vm1049, %v1047, 0
  %v1072 = vsel %vm1049, %v1048, 0
  %1074 = vmatprep.subr.mxu0 0.0
  %1075 = vmatpush1.msra.mxu0 0.0
  %1076 = vmatprep.subr.mxu0 0.0
  %1077 = vmatpush1.msra.mxu0 0.0
  %1078 = vmatprep.subr.mxu0 0.0
  %1079 = vmatpush1.msra.mxu0 0.0
  %1080 = vmatprep.subr.mxu0 0.0
  %1081 = vmatpush1.msra.mxu0 0.0
  %1082 = vmatprep.subr.mxu0 0.0
  %1083 = vmatpush1.msra.mxu0 0.0
  %1084 = vmatprep.subr.mxu0 0.0
  %1085 = vmatpush1.msra.mxu0 0.0
  %1086 = vmatprep.subr.mxu0 0.0
  %v1087 = vand.u32 %v1040, 4294901760
  %1088 = vmatpush1.msra.mxu0 %v1087
  %1089 = vmatprep.subr.mxu0 0.0
  %v1090 = vand.u32 %v1039, 4294901760
  %1091 = vmatpush1.msra.mxu0 %v1090
  %1092 = vmatprep.subr.mxu0 0.0
  %v1093 = vand.u32 %v1038, 4294901760
  %1094 = vmatpush1.msra.mxu0 %v1093
  %1095 = vmatprep.subr.mxu0 0.0
  %v1096 = vand.u32 %v1037, 4294901760
  %1097 = vmatpush1.msra.mxu0 %v1096
  %1098 = vmatprep.subr.mxu0 0.0
  %v1099 = vand.u32 %v1036, 4294901760
  %1100 = vmatpush1.msra.mxu0 %v1099
  %1101 = vmatprep.subr.mxu0 0.0
  %v1102 = vand.u32 %v1035, 4294901760
  %1103 = vmatpush1.msra.mxu0 %v1102
  %1104 = vmatprep.subr.mxu0 0.0
  %v1105 = vand.u32 %v1034, 4294901760
  %1106 = vmatpush1.msra.mxu0 %v1105
  %1107 = vmatprep.subr.mxu0 0.0
  %v1108 = vand.u32 %v1033, 4294901760
  %1109 = vmatpush1.msra.mxu0 %v1108
  %1110 = vmatprep.subr.mxu0 0.0
  %v1111 = vand.u32 %v1032, 4294901760
  %1112 = vmatpush1.msra.mxu0 %v1111
  %1113 = vmatprep.subr.mxu0 0.0
  %v1114 = vand.u32 %v1031, 4294901760
  %1115 = vmatpush1.msra.mxu0 %v1114
  %1116 = vmatprep.subr.mxu0 0.0
  %1117 = vmatpush2.msra.mxu0 0.0
  %1118 = vmatprep.subr.mxu0 0.0
  %1119 = vmatpush2.msra.mxu0 0.0
  %1120 = vmatprep.subr.mxu0 0.0
  %1121 = vmatpush2.msra.mxu0 0.0
  %1122 = vmatprep.subr.mxu0 0.0
  %1123 = vmatpush2.msra.mxu0 0.0
  %1124 = vmatprep.subr.mxu0 0.0
  %1125 = vmatpush2.msra.mxu0 0.0
  %1126 = vmatprep.subr.mxu0 0.0
  %1127 = vmatpush2.msra.mxu0 0.0
  %1128 = vmatprep.subr.mxu0 0.0
  %1129 = vmatpush2.msra.mxu0 0.0
  %1130 = vmatprep.subr.mxu0 0.0
  %1131 = vmatpush2.msra.mxu0 0.0
  %1132 = vmatprep.subr.mxu0 0.0
  %1133 = vmatpush2.msra.mxu0 0.0
  %1134 = vmatprep.subr.mxu0 0.0
  %1135 = vmatpush2.msra.mxu0 0.0
  %1136 = vmatprep.subr.mxu0 0.0
  %1137 = vmatpush2.msra.mxu0 0.0
  %1138 = vmatprep.subr.mxu0 0.0
  %1139 = vmatpush2.msra.mxu0 0.0
  %1140 = vmatprep.subr.mxu0 0.0
  %1141 = vmatpush2.msra.mxu0 0.0
  %1142 = vmatprep.subr.mxu0 0.0
  %1143 = vmatpush2.msra.mxu0 0.0
  %1144 = vmatprep.subr.mxu0 0.0
  %1145 = vmatpush2.msra.mxu0 0.0
  %1146 = vmatprep.subr.mxu0 0.0
  %1147 = vmatpush2.msra.mxu0 0.0
  %1148 = vmatprep.mubr.f32.mxu0 0.0
  %v1149 = vand.u32 %v1051, 4294901760
  %v1150 = vsub.f32 %v1051, %v1149
  %v1151 = vand.u32 %v1150, 4294901760
  %v1152 = vsub.f32 %v1150, %v1151
  %v1153 = vand.u32 %v1152, 4294901760
  %1154 = vmatmul.mubr.f32.gmra.mxu0 %v1153
  %v1155 = vpop.f32.mrf.mxu0
  %v1156 = vadd.f32 0.0, %v1155
  %v1157 = vpop.f32.mrf.mxu0
  %1158 = vmatprep.mubr.f32.mxu0 0.0
  %v1159 = vand.u32 %v1054, 4294901760
  %v1160 = vsub.f32 %v1054, %v1159
  %v1161 = vand.u32 %v1160, 4294901760
  %v1162 = vsub.f32 %v1160, %v1161
  %v1163 = vand.u32 %v1162, 4294901760
  %1164 = vmatmul.mubr.f32.gmra.mxu0 %v1163
  %v1165 = vpop.f32.mrf.mxu0
  %v1166 = vadd.f32 0.0, %v1165
  %v1167 = vpop.f32.mrf.mxu0
  %1168 = vmatprep.mubr.f32.mxu0 0.0
  %v1169 = vand.u32 %v1057, 4294901760
  %v1170 = vsub.f32 %v1057, %v1169
  %v1171 = vand.u32 %v1170, 4294901760
  %v1172 = vsub.f32 %v1170, %v1171
  %v1173 = vand.u32 %v1172, 4294901760
  %1174 = vmatmul.mubr.f32.gmra.mxu0 %v1173
  %v1175 = vpop.f32.mrf.mxu0
  %v1176 = vadd.f32 0.0, %v1175
  %v1177 = vpop.f32.mrf.mxu0
  %1178 = vmatprep.mubr.f32.mxu0 0.0
  %v1179 = vand.u32 %v1060, 4294901760
  %v1180 = vsub.f32 %v1060, %v1179
  %v1181 = vand.u32 %v1180, 4294901760
  %v1182 = vsub.f32 %v1180, %v1181
  %v1183 = vand.u32 %v1182, 4294901760
  %1184 = vmatmul.mubr.f32.gmra.mxu0 %v1183
  %v1185 = vpop.f32.mrf.mxu0
  %v1186 = vadd.f32 0.0, %v1185
  %v1187 = vpop.f32.mrf.mxu0
  %1188 = vmatprep.mubr.f32.mxu0 0.0
  %v1189 = vand.u32 %v1063, 4294901760
  %v1190 = vsub.f32 %v1063, %v1189
  %v1191 = vand.u32 %v1190, 4294901760
  %v1192 = vsub.f32 %v1190, %v1191
  %v1193 = vand.u32 %v1192, 4294901760
  %1194 = vmatmul.mubr.f32.gmra.mxu0 %v1193
  %v1195 = vpop.f32.mrf.mxu0
  %v1196 = vadd.f32 0.0, %v1195
  %v1197 = vpop.f32.mrf.mxu0
  %1198 = vmatprep.mubr.f32.mxu0 0.0
  %v1199 = vand.u32 %v1066, 4294901760
  %v1200 = vsub.f32 %v1066, %v1199
  %v1201 = vand.u32 %v1200, 4294901760
  %v1202 = vsub.f32 %v1200, %v1201
  %v1203 = vand.u32 %v1202, 4294901760
  %1204 = vmatmul.mubr.f32.gmra.mxu0 %v1203
  %v1205 = vpop.f32.mrf.mxu0
  %v1206 = vadd.f32 0.0, %v1205
  %v1207 = vpop.f32.mrf.mxu0
  %1208 = vmatprep.mubr.f32.mxu0 0.0
  %v1209 = vand.u32 %v1069, 4294901760
  %v1210 = vsub.f32 %v1069, %v1209
  %v1211 = vand.u32 %v1210, 4294901760
  %v1212 = vsub.f32 %v1210, %v1211
  %v1213 = vand.u32 %v1212, 4294901760
  %1214 = vmatmul.mubr.f32.gmra.mxu0 %v1213
  %v1215 = vpop.f32.mrf.mxu0
  %v1216 = vadd.f32 0.0, %v1215
  %v1217 = vpop.f32.mrf.mxu0
  %1218 = vmatprep.mubr.f32.mxu0 0.0
  %v1219 = vand.u32 %v1072, 4294901760
  %v1220 = vsub.f32 %v1072, %v1219
  %v1221 = vand.u32 %v1220, 4294901760
  %v1222 = vsub.f32 %v1220, %v1221
  %v1223 = vand.u32 %v1222, 4294901760
  %1224 = vmatmul.mubr.f32.gmra.mxu0 %v1223
  %v1225 = vpop.f32.mrf.mxu0
  %v1226 = vadd.f32 0.0, %v1225
  %v1227 = vpop.f32.mrf.mxu0
  %1228 = vdwg.mxu0
  %1229 = vmatprep.subr.mxu0 0.0
  %1230 = vmatpush1.msra.mxu0 0.0
  %1231 = vmatprep.subr.mxu0 0.0
  %1232 = vmatpush1.msra.mxu0 0.0
  %1233 = vmatprep.subr.mxu0 0.0
  %1234 = vmatpush1.msra.mxu0 0.0
  %1235 = vmatprep.subr.mxu0 0.0
  %1236 = vmatpush1.msra.mxu0 0.0
  %1237 = vmatprep.subr.mxu0 0.0
  %1238 = vmatpush1.msra.mxu0 0.0
  %1239 = vmatprep.subr.mxu0 0.0
  %1240 = vmatpush1.msra.mxu0 0.0
  %1241 = vmatprep.subr.mxu0 0.0
  %v1242 = vand.u32 %v1040, 4294901760
  %v1243 = vsub.f32 %v1040, %v1242
  %v1244 = vand.u32 %v1243, 4294901760
  %v1245 = vsub.f32 %v1243, %v1244
  %v1246 = vand.u32 %v1245, 4294901760
  %1247 = vmatpush1.msra.mxu0 %v1246
  %1248 = vmatprep.subr.mxu0 0.0
  %v1249 = vand.u32 %v1039, 4294901760
  %v1250 = vsub.f32 %v1039, %v1249
  %v1251 = vand.u32 %v1250, 4294901760
  %v1252 = vsub.f32 %v1250, %v1251
  %v1253 = vand.u32 %v1252, 4294901760
  %1254 = vmatpush1.msra.mxu0 %v1253
  %1255 = vmatprep.subr.mxu0 0.0
  %v1256 = vand.u32 %v1038, 4294901760
  %v1257 = vsub.f32 %v1038, %v1256
  %v1258 = vand.u32 %v1257, 4294901760
  %v1259 = vsub.f32 %v1257, %v1258
  %v1260 = vand.u32 %v1259, 4294901760
  %1261 = vmatpush1.msra.mxu0 %v1260
  %1262 = vmatprep.subr.mxu0 0.0
  %v1263 = vand.u32 %v1037, 4294901760
  %v1264 = vsub.f32 %v1037, %v1263
  %v1265 = vand.u32 %v1264, 4294901760
  %v1266 = vsub.f32 %v1264, %v1265
  %v1267 = vand.u32 %v1266, 4294901760
  %1268 = vmatpush1.msra.mxu0 %v1267
  %1269 = vmatprep.subr.mxu0 0.0
  %v1270 = vand.u32 %v1036, 4294901760
  %v1271 = vsub.f32 %v1036, %v1270
  %v1272 = vand.u32 %v1271, 4294901760
  %v1273 = vsub.f32 %v1271, %v1272
  %v1274 = vand.u32 %v1273, 4294901760
  %1275 = vmatpush1.msra.mxu0 %v1274
  %1276 = vmatprep.subr.mxu0 0.0
  %v1277 = vand.u32 %v1035, 4294901760
  %v1278 = vsub.f32 %v1035, %v1277
  %v1279 = vand.u32 %v1278, 4294901760
  %v1280 = vsub.f32 %v1278, %v1279
  %v1281 = vand.u32 %v1280, 4294901760
  %1282 = vmatpush1.msra.mxu0 %v1281
  %1283 = vmatprep.subr.mxu0 0.0
  %v1284 = vand.u32 %v1034, 4294901760
  %v1285 = vsub.f32 %v1034, %v1284
  %v1286 = vand.u32 %v1285, 4294901760
  %v1287 = vsub.f32 %v1285, %v1286
  %v1288 = vand.u32 %v1287, 4294901760
  %1289 = vmatpush1.msra.mxu0 %v1288
  %1290 = vmatprep.subr.mxu0 0.0
  %v1291 = vand.u32 %v1033, 4294901760
  %v1292 = vsub.f32 %v1033, %v1291
  %v1293 = vand.u32 %v1292, 4294901760
  %v1294 = vsub.f32 %v1292, %v1293
  %v1295 = vand.u32 %v1294, 4294901760
  %1296 = vmatpush1.msra.mxu0 %v1295
  %1297 = vmatprep.subr.mxu0 0.0
  %v1298 = vand.u32 %v1032, 4294901760
  %v1299 = vsub.f32 %v1032, %v1298
  %v1300 = vand.u32 %v1299, 4294901760
  %v1301 = vsub.f32 %v1299, %v1300
  %v1302 = vand.u32 %v1301, 4294901760
  %1303 = vmatpush1.msra.mxu0 %v1302
  %1304 = vmatprep.subr.mxu0 0.0
  %v1305 = vand.u32 %v1031, 4294901760
  %v1306 = vsub.f32 %v1031, %v1305
  %v1307 = vand.u32 %v1306, 4294901760
  %v1308 = vsub.f32 %v1306, %v1307
  %v1309 = vand.u32 %v1308, 4294901760
  %1310 = vmatpush1.msra.mxu0 %v1309
  %1311 = vmatprep.subr.mxu0 0.0
  %1312 = vmatpush2.msra.mxu0 0.0
  %1313 = vmatprep.subr.mxu0 0.0
  %1314 = vmatpush2.msra.mxu0 0.0
  %1315 = vmatprep.subr.mxu0 0.0
  %1316 = vmatpush2.msra.mxu0 0.0
  %1317 = vmatprep.subr.mxu0 0.0
  %1318 = vmatpush2.msra.mxu0 0.0
  %1319 = vmatprep.subr.mxu0 0.0
  %1320 = vmatpush2.msra.mxu0 0.0
  %1321 = vmatprep.subr.mxu0 0.0
  %1322 = vmatpush2.msra.mxu0 0.0
  %1323 = vmatprep.subr.mxu0 0.0
  %1324 = vmatpush2.msra.mxu0 0.0
  %1325 = vmatprep.subr.mxu0 0.0
  %1326 = vmatpush2.msra.mxu0 0.0
  %1327 = vmatprep.subr.mxu0 0.0
  %1328 = vmatpush2.msra.mxu0 0.0
  %1329 = vmatprep.subr.mxu0 0.0
  %1330 = vmatpush2.msra.mxu0 0.0
  %1331 = vmatprep.subr.mxu0 0.0
  %1332 = vmatpush2.msra.mxu0 0.0
  %1333 = vmatprep.subr.mxu0 0.0
  %1334 = vmatpush2.msra.mxu0 0.0
  %1335 = vmatprep.subr.mxu0 0.0
  %1336 = vmatpush2.msra.mxu0 0.0
  %1337 = vmatprep.subr.mxu0 0.0
  %1338 = vmatpush2.msra.mxu0 0.0
  %1339 = vmatprep.subr.mxu0 0.0
  %1340 = vmatpush2.msra.mxu0 0.0
  %1341 = vmatprep.subr.mxu0 0.0
  %1342 = vmatpush2.msra.mxu0 0.0
  %1343 = vmatprep.mubr.f32.mxu0 0.0
  %v1344 = vand.u32 %v1051, 4294901760
  %1345 = vmatmul.mubr.f32.gmra.mxu0 %v1344
  %v1346 = vpop.f32.mrf.mxu0
  %v1347 = vadd.f32 %v1156, %v1346
  %v1348 = vpop.f32.mrf.mxu0
  %1349 = vmatprep.mubr.f32.mxu0 0.0
  %v1350 = vand.u32 %v1054, 4294901760
  %1351 = vmatmul.mubr.f32.gmra.mxu0 %v1350
  %v1352 = vpop.f32.mrf.mxu0
  %v1353 = vadd.f32 %v1166, %v1352
  %v1354 = vpop.f32.mrf.mxu0
  %1355 = vmatprep.mubr.f32.mxu0 0.0
  %v1356 = vand.u32 %v1057, 4294901760
  %1357 = vmatmul.mubr.f32.gmra.mxu0 %v1356
  %v1358 = vpop.f32.mrf.mxu0
  %v1359 = vadd.f32 %v1176, %v1358
  %v1360 = vpop.f32.mrf.mxu0
  %1361 = vmatprep.mubr.f32.mxu0 0.0
  %v1362 = vand.u32 %v1060, 4294901760
  %1363 = vmatmul.mubr.f32.gmra.mxu0 %v1362
  %v1364 = vpop.f32.mrf.mxu0
  %v1365 = vadd.f32 %v1186, %v1364
  %v1366 = vpop.f32.mrf.mxu0
  %1367 = vmatprep.mubr.f32.mxu0 0.0
  %v1368 = vand.u32 %v1063, 4294901760
  %1369 = vmatmul.mubr.f32.gmra.mxu0 %v1368
  %v1370 = vpop.f32.mrf.mxu0
  %v1371 = vadd.f32 %v1196, %v1370
  %v1372 = vpop.f32.mrf.mxu0
  %1373 = vmatprep.mubr.f32.mxu0 0.0
  %v1374 = vand.u32 %v1066, 4294901760
  %1375 = vmatmul.mubr.f32.gmra.mxu0 %v1374
  %v1376 = vpop.f32.mrf.mxu0
  %v1377 = vadd.f32 %v1206, %v1376
  %v1378 = vpop.f32.mrf.mxu0
  %1379 = vmatprep.mubr.f32.mxu0 0.0
  %v1380 = vand.u32 %v1069, 4294901760
  %1381 = vmatmul.mubr.f32.gmra.mxu0 %v1380
  %v1382 = vpop.f32.mrf.mxu0
  %v1383 = vadd.f32 %v1216, %v1382
  %v1384 = vpop.f32.mrf.mxu0
  %1385 = vmatprep.mubr.f32.mxu0 0.0
  %v1386 = vand.u32 %v1072, 4294901760
  %1387 = vmatmul.mubr.f32.gmra.mxu0 %v1386
  %v1388 = vpop.f32.mrf.mxu0
  %v1389 = vadd.f32 %v1226, %v1388
  %v1390 = vpop.f32.mrf.mxu0
  %1391 = vdwg.mxu0
  %1392 = vmatprep.subr.mxu0 0.0
  %1393 = vmatpush1.msra.mxu0 0.0
  %1394 = vmatprep.subr.mxu0 0.0
  %1395 = vmatpush1.msra.mxu0 0.0
  %1396 = vmatprep.subr.mxu0 0.0
  %1397 = vmatpush1.msra.mxu0 0.0
  %1398 = vmatprep.subr.mxu0 0.0
  %1399 = vmatpush1.msra.mxu0 0.0
  %1400 = vmatprep.subr.mxu0 0.0
  %1401 = vmatpush1.msra.mxu0 0.0
  %1402 = vmatprep.subr.mxu0 0.0
  %1403 = vmatpush1.msra.mxu0 0.0
  %1404 = vmatprep.subr.mxu0 0.0
  %v1405 = vand.u32 %v1040, 4294901760
  %v1406 = vsub.f32 %v1040, %v1405
  %1407 = vmatpush1.msra.mxu0 %v1406
  %1408 = vmatprep.subr.mxu0 0.0
  %v1409 = vand.u32 %v1039, 4294901760
  %v1410 = vsub.f32 %v1039, %v1409
  %1411 = vmatpush1.msra.mxu0 %v1410
  %1412 = vmatprep.subr.mxu0 0.0
  %v1413 = vand.u32 %v1038, 4294901760
  %v1414 = vsub.f32 %v1038, %v1413
  %1415 = vmatpush1.msra.mxu0 %v1414
  %1416 = vmatprep.subr.mxu0 0.0
  %v1417 = vand.u32 %v1037, 4294901760
  %v1418 = vsub.f32 %v1037, %v1417
  %1419 = vmatpush1.msra.mxu0 %v1418
  %1420 = vmatprep.subr.mxu0 0.0
  %v1421 = vand.u32 %v1036, 4294901760
  %v1422 = vsub.f32 %v1036, %v1421
  %1423 = vmatpush1.msra.mxu0 %v1422
  %1424 = vmatprep.subr.mxu0 0.0
  %v1425 = vand.u32 %v1035, 4294901760
  %v1426 = vsub.f32 %v1035, %v1425
  %1427 = vmatpush1.msra.mxu0 %v1426
  %1428 = vmatprep.subr.mxu0 0.0
  %v1429 = vand.u32 %v1034, 4294901760
  %v1430 = vsub.f32 %v1034, %v1429
  %1431 = vmatpush1.msra.mxu0 %v1430
  %1432 = vmatprep.subr.mxu0 0.0
  %v1433 = vand.u32 %v1033, 4294901760
  %v1434 = vsub.f32 %v1033, %v1433
  %1435 = vmatpush1.msra.mxu0 %v1434
  %1436 = vmatprep.subr.mxu0 0.0
  %v1437 = vand.u32 %v1032, 4294901760
  %v1438 = vsub.f32 %v1032, %v1437
  %1439 = vmatpush1.msra.mxu0 %v1438
  %1440 = vmatprep.subr.mxu0 0.0
  %v1441 = vand.u32 %v1031, 4294901760
  %v1442 = vsub.f32 %v1031, %v1441
  %1443 = vmatpush1.msra.mxu0 %v1442
  %1444 = vmatprep.subr.mxu0 0.0
  %1445 = vmatpush2.msra.mxu0 0.0
  %1446 = vmatprep.subr.mxu0 0.0
  %1447 = vmatpush2.msra.mxu0 0.0
  %1448 = vmatprep.subr.mxu0 0.0
  %1449 = vmatpush2.msra.mxu0 0.0
  %1450 = vmatprep.subr.mxu0 0.0
  %1451 = vmatpush2.msra.mxu0 0.0
  %1452 = vmatprep.subr.mxu0 0.0
  %1453 = vmatpush2.msra.mxu0 0.0
  %1454 = vmatprep.subr.mxu0 0.0
  %1455 = vmatpush2.msra.mxu0 0.0
  %1456 = vmatprep.subr.mxu0 0.0
  %1457 = vmatpush2.msra.mxu0 0.0
  %1458 = vmatprep.subr.mxu0 0.0
  %1459 = vmatpush2.msra.mxu0 0.0
  %1460 = vmatprep.subr.mxu0 0.0
  %1461 = vmatpush2.msra.mxu0 0.0
  %1462 = vmatprep.subr.mxu0 0.0
  %1463 = vmatpush2.msra.mxu0 0.0
  %1464 = vmatprep.subr.mxu0 0.0
  %1465 = vmatpush2.msra.mxu0 0.0
  %1466 = vmatprep.subr.mxu0 0.0
  %1467 = vmatpush2.msra.mxu0 0.0
  %1468 = vmatprep.subr.mxu0 0.0
  %1469 = vmatpush2.msra.mxu0 0.0
  %1470 = vmatprep.subr.mxu0 0.0
  %1471 = vmatpush2.msra.mxu0 0.0
  %1472 = vmatprep.subr.mxu0 0.0
  %1473 = vmatpush2.msra.mxu0 0.0
  %1474 = vmatprep.subr.mxu0 0.0
  %1475 = vmatpush2.msra.mxu0 0.0
  %1476 = vmatprep.mubr.f32.mxu0 0.0
  %v1477 = vand.u32 %v1051, 4294901760
  %v1478 = vsub.f32 %v1051, %v1477
  %1479 = vmatmul.mubr.f32.gmra.mxu0 %v1478
  %v1480 = vpop.f32.mrf.mxu0
  %v1481 = vadd.f32 %v1347, %v1480
  %v1482 = vpop.f32.mrf.mxu0
  %1483 = vmatprep.mubr.f32.mxu0 0.0
  %v1484 = vand.u32 %v1054, 4294901760
  %v1485 = vsub.f32 %v1054, %v1484
  %1486 = vmatmul.mubr.f32.gmra.mxu0 %v1485
  %v1487 = vpop.f32.mrf.mxu0
  %v1488 = vadd.f32 %v1353, %v1487
  %v1489 = vpop.f32.mrf.mxu0
  %1490 = vmatprep.mubr.f32.mxu0 0.0
  %v1491 = vand.u32 %v1057, 4294901760
  %v1492 = vsub.f32 %v1057, %v1491
  %1493 = vmatmul.mubr.f32.gmra.mxu0 %v1492
  %v1494 = vpop.f32.mrf.mxu0
  %v1495 = vadd.f32 %v1359, %v1494
  %v1496 = vpop.f32.mrf.mxu0
  %1497 = vmatprep.mubr.f32.mxu0 0.0
  %v1498 = vand.u32 %v1060, 4294901760
  %v1499 = vsub.f32 %v1060, %v1498
  %1500 = vmatmul.mubr.f32.gmra.mxu0 %v1499
  %v1501 = vpop.f32.mrf.mxu0
  %v1502 = vadd.f32 %v1365, %v1501
  %v1503 = vpop.f32.mrf.mxu0
  %1504 = vmatprep.mubr.f32.mxu0 0.0
  %v1505 = vand.u32 %v1063, 4294901760
  %v1506 = vsub.f32 %v1063, %v1505
  %1507 = vmatmul.mubr.f32.gmra.mxu0 %v1506
  %v1508 = vpop.f32.mrf.mxu0
  %v1509 = vadd.f32 %v1371, %v1508
  %v1510 = vpop.f32.mrf.mxu0
  %1511 = vmatprep.mubr.f32.mxu0 0.0
  %v1512 = vand.u32 %v1066, 4294901760
  %v1513 = vsub.f32 %v1066, %v1512
  %1514 = vmatmul.mubr.f32.gmra.mxu0 %v1513
  %v1515 = vpop.f32.mrf.mxu0
  %v1516 = vadd.f32 %v1377, %v1515
  %v1517 = vpop.f32.mrf.mxu0
  %1518 = vmatprep.mubr.f32.mxu0 0.0
  %v1519 = vand.u32 %v1069, 4294901760
  %v1520 = vsub.f32 %v1069, %v1519
  %1521 = vmatmul.mubr.f32.gmra.mxu0 %v1520
  %v1522 = vpop.f32.mrf.mxu0
  %v1523 = vadd.f32 %v1383, %v1522
  %v1524 = vpop.f32.mrf.mxu0
  %1525 = vmatprep.mubr.f32.mxu0 0.0
  %v1526 = vand.u32 %v1072, 4294901760
  %v1527 = vsub.f32 %v1072, %v1526
  %1528 = vmatmul.mubr.f32.gmra.mxu0 %v1527
  %v1529 = vpop.f32.mrf.mxu0
  %v1530 = vadd.f32 %v1389, %v1529
  %v1531 = vpop.f32.mrf.mxu0
  %1532 = vdwg.mxu0
  %1533 = vmatprep.subr.mxu0 0.0
  %1534 = vmatpush1.msra.mxu0 0.0
  %1535 = vmatprep.subr.mxu0 0.0
  %1536 = vmatpush1.msra.mxu0 0.0
  %1537 = vmatprep.subr.mxu0 0.0
  %1538 = vmatpush1.msra.mxu0 0.0
  %1539 = vmatprep.subr.mxu0 0.0
  %1540 = vmatpush1.msra.mxu0 0.0
  %1541 = vmatprep.subr.mxu0 0.0
  %1542 = vmatpush1.msra.mxu0 0.0
  %1543 = vmatprep.subr.mxu0 0.0
  %1544 = vmatpush1.msra.mxu0 0.0
  %1545 = vmatprep.subr.mxu0 0.0
  %v1546 = vand.u32 %v1040, 4294901760
  %1547 = vmatpush1.msra.mxu0 %v1546
  %1548 = vmatprep.subr.mxu0 0.0
  %v1549 = vand.u32 %v1039, 4294901760
  %1550 = vmatpush1.msra.mxu0 %v1549
  %1551 = vmatprep.subr.mxu0 0.0
  %v1552 = vand.u32 %v1038, 4294901760
  %1553 = vmatpush1.msra.mxu0 %v1552
  %1554 = vmatprep.subr.mxu0 0.0
  %v1555 = vand.u32 %v1037, 4294901760
  %1556 = vmatpush1.msra.mxu0 %v1555
  %1557 = vmatprep.subr.mxu0 0.0
  %v1558 = vand.u32 %v1036, 4294901760
  %1559 = vmatpush1.msra.mxu0 %v1558
  %1560 = vmatprep.subr.mxu0 0.0
  %v1561 = vand.u32 %v1035, 4294901760
  %1562 = vmatpush1.msra.mxu0 %v1561
  %1563 = vmatprep.subr.mxu0 0.0
  %v1564 = vand.u32 %v1034, 4294901760
  %1565 = vmatpush1.msra.mxu0 %v1564
  %1566 = vmatprep.subr.mxu0 0.0
  %v1567 = vand.u32 %v1033, 4294901760
  %1568 = vmatpush1.msra.mxu0 %v1567
  %1569 = vmatprep.subr.mxu0 0.0
  %v1570 = vand.u32 %v1032, 4294901760
  %1571 = vmatpush1.msra.mxu0 %v1570
  %1572 = vmatprep.subr.mxu0 0.0
  %v1573 = vand.u32 %v1031, 4294901760
  %1574 = vmatpush1.msra.mxu0 %v1573
  %1575 = vmatprep.subr.mxu0 0.0
  %1576 = vmatpush2.msra.mxu0 0.0
  %1577 = vmatprep.subr.mxu0 0.0
  %1578 = vmatpush2.msra.mxu0 0.0
  %1579 = vmatprep.subr.mxu0 0.0
  %1580 = vmatpush2.msra.mxu0 0.0
  %1581 = vmatprep.subr.mxu0 0.0
  %1582 = vmatpush2.msra.mxu0 0.0
  %1583 = vmatprep.subr.mxu0 0.0
  %1584 = vmatpush2.msra.mxu0 0.0
  %1585 = vmatprep.subr.mxu0 0.0
  %1586 = vmatpush2.msra.mxu0 0.0
  %1587 = vmatprep.subr.mxu0 0.0
  %1588 = vmatpush2.msra.mxu0 0.0
  %1589 = vmatprep.subr.mxu0 0.0
  %1590 = vmatpush2.msra.mxu0 0.0
  %1591 = vmatprep.subr.mxu0 0.0
  %1592 = vmatpush2.msra.mxu0 0.0
  %1593 = vmatprep.subr.mxu0 0.0
  %1594 = vmatpush2.msra.mxu0 0.0
  %1595 = vmatprep.subr.mxu0 0.0
  %1596 = vmatpush2.msra.mxu0 0.0
  %1597 = vmatprep.subr.mxu0 0.0
  %1598 = vmatpush2.msra.mxu0 0.0
  %1599 = vmatprep.subr.mxu0 0.0
  %1600 = vmatpush2.msra.mxu0 0.0
  %1601 = vmatprep.subr.mxu0 0.0
  %1602 = vmatpush2.msra.mxu0 0.0
  %1603 = vmatprep.subr.mxu0 0.0
  %1604 = vmatpush2.msra.mxu0 0.0
  %1605 = vmatprep.subr.mxu0 0.0
  %1606 = vmatpush2.msra.mxu0 0.0
  %1607 = vmatprep.mubr.f32.mxu0 0.0
  %v1608 = vand.u32 %v1051, 4294901760
  %v1609 = vsub.f32 %v1051, %v1608
  %v1610 = vand.u32 %v1609, 4294901760
  %1611 = vmatmul.mubr.f32.gmra.mxu0 %v1610
  %v1612 = vpop.f32.mrf.mxu0
  %v1613 = vadd.f32 %v1481, %v1612
  %v1614 = vpop.f32.mrf.mxu0
  %1615 = vmatprep.mubr.f32.mxu0 0.0
  %v1616 = vand.u32 %v1054, 4294901760
  %v1617 = vsub.f32 %v1054, %v1616
  %v1618 = vand.u32 %v1617, 4294901760
  %1619 = vmatmul.mubr.f32.gmra.mxu0 %v1618
  %v1620 = vpop.f32.mrf.mxu0
  %v1621 = vadd.f32 %v1488, %v1620
  %v1622 = vpop.f32.mrf.mxu0
  %1623 = vmatprep.mubr.f32.mxu0 0.0
  %v1624 = vand.u32 %v1057, 4294901760
  %v1625 = vsub.f32 %v1057, %v1624
  %v1626 = vand.u32 %v1625, 4294901760
  %1627 = vmatmul.mubr.f32.gmra.mxu0 %v1626
  %v1628 = vpop.f32.mrf.mxu0
  %v1629 = vadd.f32 %v1495, %v1628
  %v1630 = vpop.f32.mrf.mxu0
  %1631 = vmatprep.mubr.f32.mxu0 0.0
  %v1632 = vand.u32 %v1060, 4294901760
  %v1633 = vsub.f32 %v1060, %v1632
  %v1634 = vand.u32 %v1633, 4294901760
  %1635 = vmatmul.mubr.f32.gmra.mxu0 %v1634
  %v1636 = vpop.f32.mrf.mxu0
  %v1637 = vadd.f32 %v1502, %v1636
  %v1638 = vpop.f32.mrf.mxu0
  %1639 = vmatprep.mubr.f32.mxu0 0.0
  %v1640 = vand.u32 %v1063, 4294901760
  %v1641 = vsub.f32 %v1063, %v1640
  %v1642 = vand.u32 %v1641, 4294901760
  %1643 = vmatmul.mubr.f32.gmra.mxu0 %v1642
  %v1644 = vpop.f32.mrf.mxu0
  %v1645 = vadd.f32 %v1509, %v1644
  %v1646 = vpop.f32.mrf.mxu0
  %1647 = vmatprep.mubr.f32.mxu0 0.0
  %v1648 = vand.u32 %v1066, 4294901760
  %v1649 = vsub.f32 %v1066, %v1648
  %v1650 = vand.u32 %v1649, 4294901760
  %1651 = vmatmul.mubr.f32.gmra.mxu0 %v1650
  %v1652 = vpop.f32.mrf.mxu0
  %v1653 = vadd.f32 %v1516, %v1652
  %v1654 = vpop.f32.mrf.mxu0
  %1655 = vmatprep.mubr.f32.mxu0 0.0
  %v1656 = vand.u32 %v1069, 4294901760
  %v1657 = vsub.f32 %v1069, %v1656
  %v1658 = vand.u32 %v1657, 4294901760
  %1659 = vmatmul.mubr.f32.gmra.mxu0 %v1658
  %v1660 = vpop.f32.mrf.mxu0
  %v1661 = vadd.f32 %v1523, %v1660
  %v1662 = vpop.f32.mrf.mxu0
  %1663 = vmatprep.mubr.f32.mxu0 0.0
  %v1664 = vand.u32 %v1072, 4294901760
  %v1665 = vsub.f32 %v1072, %v1664
  %v1666 = vand.u32 %v1665, 4294901760
  %1667 = vmatmul.mubr.f32.gmra.mxu0 %v1666
  %v1668 = vpop.f32.mrf.mxu0
  %v1669 = vadd.f32 %v1530, %v1668
  %v1670 = vpop.f32.mrf.mxu0
  %1671 = vdwg.mxu0
  %1672 = vmatprep.subr.mxu0 0.0
  %1673 = vmatpush1.msra.mxu0 0.0
  %1674 = vmatprep.subr.mxu0 0.0
  %1675 = vmatpush1.msra.mxu0 0.0
  %1676 = vmatprep.subr.mxu0 0.0
  %1677 = vmatpush1.msra.mxu0 0.0
  %1678 = vmatprep.subr.mxu0 0.0
  %1679 = vmatpush1.msra.mxu0 0.0
  %1680 = vmatprep.subr.mxu0 0.0
  %1681 = vmatpush1.msra.mxu0 0.0
  %1682 = vmatprep.subr.mxu0 0.0
  %1683 = vmatpush1.msra.mxu0 0.0
  %1684 = vmatprep.subr.mxu0 0.0
  %v1685 = vand.u32 %v1040, 4294901760
  %v1686 = vsub.f32 %v1040, %v1685
  %v1687 = vand.u32 %v1686, 4294901760
  %1688 = vmatpush1.msra.mxu0 %v1687
  %1689 = vmatprep.subr.mxu0 0.0
  %v1690 = vand.u32 %v1039, 4294901760
  %v1691 = vsub.f32 %v1039, %v1690
  %v1692 = vand.u32 %v1691, 4294901760
  %1693 = vmatpush1.msra.mxu0 %v1692
  %1694 = vmatprep.subr.mxu0 0.0
  %v1695 = vand.u32 %v1038, 4294901760
  %v1696 = vsub.f32 %v1038, %v1695
  %v1697 = vand.u32 %v1696, 4294901760
  %1698 = vmatpush1.msra.mxu0 %v1697
  %1699 = vmatprep.subr.mxu0 0.0
  %v1700 = vand.u32 %v1037, 4294901760
  %v1701 = vsub.f32 %v1037, %v1700
  %v1702 = vand.u32 %v1701, 4294901760
  %1703 = vmatpush1.msra.mxu0 %v1702
  %1704 = vmatprep.subr.mxu0 0.0
  %v1705 = vand.u32 %v1036, 4294901760
  %v1706 = vsub.f32 %v1036, %v1705
  %v1707 = vand.u32 %v1706, 4294901760
  %1708 = vmatpush1.msra.mxu0 %v1707
  %1709 = vmatprep.subr.mxu0 0.0
  %v1710 = vand.u32 %v1035, 4294901760
  %v1711 = vsub.f32 %v1035, %v1710
  %v1712 = vand.u32 %v1711, 4294901760
  %1713 = vmatpush1.msra.mxu0 %v1712
  %1714 = vmatprep.subr.mxu0 0.0
  %v1715 = vand.u32 %v1034, 4294901760
  %v1716 = vsub.f32 %v1034, %v1715
  %v1717 = vand.u32 %v1716, 4294901760
  %1718 = vmatpush1.msra.mxu0 %v1717
  %1719 = vmatprep.subr.mxu0 0.0
  %v1720 = vand.u32 %v1033, 4294901760
  %v1721 = vsub.f32 %v1033, %v1720
  %v1722 = vand.u32 %v1721, 4294901760
  %1723 = vmatpush1.msra.mxu0 %v1722
  %1724 = vmatprep.subr.mxu0 0.0
  %v1725 = vand.u32 %v1032, 4294901760
  %v1726 = vsub.f32 %v1032, %v1725
  %v1727 = vand.u32 %v1726, 4294901760
  %1728 = vmatpush1.msra.mxu0 %v1727
  %1729 = vmatprep.subr.mxu0 0.0
  %v1730 = vand.u32 %v1031, 4294901760
  %v1731 = vsub.f32 %v1031, %v1730
  %v1732 = vand.u32 %v1731, 4294901760
  %1733 = vmatpush1.msra.mxu0 %v1732
  %1734 = vmatprep.subr.mxu0 0.0
  %1735 = vmatpush2.msra.mxu0 0.0
  %1736 = vmatprep.subr.mxu0 0.0
  %1737 = vmatpush2.msra.mxu0 0.0
  %1738 = vmatprep.subr.mxu0 0.0
  %1739 = vmatpush2.msra.mxu0 0.0
  %1740 = vmatprep.subr.mxu0 0.0
  %1741 = vmatpush2.msra.mxu0 0.0
  %1742 = vmatprep.subr.mxu0 0.0
  %1743 = vmatpush2.msra.mxu0 0.0
  %1744 = vmatprep.subr.mxu0 0.0
  %1745 = vmatpush2.msra.mxu0 0.0
  %1746 = vmatprep.subr.mxu0 0.0
  %1747 = vmatpush2.msra.mxu0 0.0
  %1748 = vmatprep.subr.mxu0 0.0
  %1749 = vmatpush2.msra.mxu0 0.0
  %1750 = vmatprep.subr.mxu0 0.0
  %1751 = vmatpush2.msra.mxu0 0.0
  %1752 = vmatprep.subr.mxu0 0.0
  %1753 = vmatpush2.msra.mxu0 0.0
  %1754 = vmatprep.subr.mxu0 0.0
  %1755 = vmatpush2.msra.mxu0 0.0
  %1756 = vmatprep.subr.mxu0 0.0
  %1757 = vmatpush2.msra.mxu0 0.0
  %1758 = vmatprep.subr.mxu0 0.0
  %1759 = vmatpush2.msra.mxu0 0.0
  %1760 = vmatprep.subr.mxu0 0.0
  %1761 = vmatpush2.msra.mxu0 0.0
  %1762 = vmatprep.subr.mxu0 0.0
  %1763 = vmatpush2.msra.mxu0 0.0
  %1764 = vmatprep.subr.mxu0 0.0
  %1765 = vmatpush2.msra.mxu0 0.0
  %1766 = vmatprep.mubr.f32.mxu0 0.0
  %v1767 = vand.u32 %v1051, 4294901760
  %1768 = vmatmul.mubr.f32.gmra.mxu0 %v1767
  %v1769 = vpop.f32.mrf.mxu0
  %v1770 = vadd.f32 %v1613, %v1769
  %v1771 = vpop.f32.mrf.mxu0
  %1772 = vmatprep.mubr.f32.mxu0 0.0
  %v1773 = vand.u32 %v1054, 4294901760
  %1774 = vmatmul.mubr.f32.gmra.mxu0 %v1773
  %v1775 = vpop.f32.mrf.mxu0
  %v1776 = vadd.f32 %v1621, %v1775
  %v1777 = vpop.f32.mrf.mxu0
  %1778 = vmatprep.mubr.f32.mxu0 0.0
  %v1779 = vand.u32 %v1057, 4294901760
  %1780 = vmatmul.mubr.f32.gmra.mxu0 %v1779
  %v1781 = vpop.f32.mrf.mxu0
  %v1782 = vadd.f32 %v1629, %v1781
  %v1783 = vpop.f32.mrf.mxu0
  %1784 = vmatprep.mubr.f32.mxu0 0.0
  %v1785 = vand.u32 %v1060, 4294901760
  %1786 = vmatmul.mubr.f32.gmra.mxu0 %v1785
  %v1787 = vpop.f32.mrf.mxu0
  %v1788 = vadd.f32 %v1637, %v1787
  %v1789 = vpop.f32.mrf.mxu0
  %1790 = vmatprep.mubr.f32.mxu0 0.0
  %v1791 = vand.u32 %v1063, 4294901760
  %1792 = vmatmul.mubr.f32.gmra.mxu0 %v1791
  %v1793 = vpop.f32.mrf.mxu0
  %v1794 = vadd.f32 %v1645, %v1793
  %v1795 = vpop.f32.mrf.mxu0
  %1796 = vmatprep.mubr.f32.mxu0 0.0
  %v1797 = vand.u32 %v1066, 4294901760
  %1798 = vmatmul.mubr.f32.gmra.mxu0 %v1797
  %v1799 = vpop.f32.mrf.mxu0
  %v1800 = vadd.f32 %v1653, %v1799
  %v1801 = vpop.f32.mrf.mxu0
  %1802 = vmatprep.mubr.f32.mxu0 0.0
  %v1803 = vand.u32 %v1069, 4294901760
  %1804 = vmatmul.mubr.f32.gmra.mxu0 %v1803
  %v1805 = vpop.f32.mrf.mxu0
  %v1806 = vadd.f32 %v1661, %v1805
  %v1807 = vpop.f32.mrf.mxu0
  %1808 = vmatprep.mubr.f32.mxu0 0.0
  %v1809 = vand.u32 %v1072, 4294901760
  %1810 = vmatmul.mubr.f32.gmra.mxu0 %v1809
  %v1811 = vpop.f32.mrf.mxu0
  %v1812 = vadd.f32 %v1669, %v1811
  %v1813 = vpop.f32.mrf.mxu0
  %1814 = vdwg.mxu0
  %1815 = vmatprep.subr.mxu0 0.0
  %1816 = vmatpush1.msra.mxu0 0.0
  %1817 = vmatprep.subr.mxu0 0.0
  %1818 = vmatpush1.msra.mxu0 0.0
  %1819 = vmatprep.subr.mxu0 0.0
  %1820 = vmatpush1.msra.mxu0 0.0
  %1821 = vmatprep.subr.mxu0 0.0
  %1822 = vmatpush1.msra.mxu0 0.0
  %1823 = vmatprep.subr.mxu0 0.0
  %1824 = vmatpush1.msra.mxu0 0.0
  %1825 = vmatprep.subr.mxu0 0.0
  %1826 = vmatpush1.msra.mxu0 0.0
  %1827 = vmatprep.subr.mxu0 0.0
  %v1828 = vand.u32 %v1040, 4294901760
  %1829 = vmatpush1.msra.mxu0 %v1828
  %1830 = vmatprep.subr.mxu0 0.0
  %v1831 = vand.u32 %v1039, 4294901760
  %1832 = vmatpush1.msra.mxu0 %v1831
  %1833 = vmatprep.subr.mxu0 0.0
  %v1834 = vand.u32 %v1038, 4294901760
  %1835 = vmatpush1.msra.mxu0 %v1834
  %1836 = vmatprep.subr.mxu0 0.0
  %v1837 = vand.u32 %v1037, 4294901760
  %1838 = vmatpush1.msra.mxu0 %v1837
  %1839 = vmatprep.subr.mxu0 0.0
  %v1840 = vand.u32 %v1036, 4294901760
  %1841 = vmatpush1.msra.mxu0 %v1840
  %1842 = vmatprep.subr.mxu0 0.0
  %v1843 = vand.u32 %v1035, 4294901760
  %1844 = vmatpush1.msra.mxu0 %v1843
  %1845 = vmatprep.subr.mxu0 0.0
  %v1846 = vand.u32 %v1034, 4294901760
  %1847 = vmatpush1.msra.mxu0 %v1846
  %1848 = vmatprep.subr.mxu0 0.0
  %v1849 = vand.u32 %v1033, 4294901760
  %1850 = vmatpush1.msra.mxu0 %v1849
  %1851 = vmatprep.subr.mxu0 0.0
  %v1852 = vand.u32 %v1032, 4294901760
  %1853 = vmatpush1.msra.mxu0 %v1852
  %1854 = vmatprep.subr.mxu0 0.0
  %v1855 = vand.u32 %v1031, 4294901760
  %1856 = vmatpush1.msra.mxu0 %v1855
  %1857 = vmatprep.subr.mxu0 0.0
  %1858 = vmatpush2.msra.mxu0 0.0
  %1859 = vmatprep.subr.mxu0 0.0
  %1860 = vmatpush2.msra.mxu0 0.0
  %1861 = vmatprep.subr.mxu0 0.0
  %1862 = vmatpush2.msra.mxu0 0.0
  %1863 = vmatprep.subr.mxu0 0.0
  %1864 = vmatpush2.msra.mxu0 0.0
  %1865 = vmatprep.subr.mxu0 0.0
  %1866 = vmatpush2.msra.mxu0 0.0
  %1867 = vmatprep.subr.mxu0 0.0
  %1868 = vmatpush2.msra.mxu0 0.0
  %1869 = vmatprep.subr.mxu0 0.0
  %1870 = vmatpush2.msra.mxu0 0.0
  %1871 = vmatprep.subr.mxu0 0.0
  %1872 = vmatpush2.msra.mxu0 0.0
  %1873 = vmatprep.subr.mxu0 0.0
  %1874 = vmatpush2.msra.mxu0 0.0
  %1875 = vmatprep.subr.mxu0 0.0
  %1876 = vmatpush2.msra.mxu0 0.0
  %1877 = vmatprep.subr.mxu0 0.0
  %1878 = vmatpush2.msra.mxu0 0.0
  %1879 = vmatprep.subr.mxu0 0.0
  %1880 = vmatpush2.msra.mxu0 0.0
  %1881 = vmatprep.subr.mxu0 0.0
  %1882 = vmatpush2.msra.mxu0 0.0
  %1883 = vmatprep.subr.mxu0 0.0
  %1884 = vmatpush2.msra.mxu0 0.0
  %1885 = vmatprep.subr.mxu0 0.0
  %1886 = vmatpush2.msra.mxu0 0.0
  %1887 = vmatprep.subr.mxu0 0.0
  %1888 = vmatpush2.msra.mxu0 0.0
  %1889 = vmatprep.mubr.f32.mxu0 0.0
  %v1890 = vand.u32 %v1051, 4294901760
  %1891 = vmatmul.mubr.f32.gmra.mxu0 %v1890
  %v1892 = vpop.f32.mrf.mxu0
  %v1893 = vadd.f32 %v1770, %v1892
  %v1894 = vpop.f32.mrf.mxu0
  %1895 = vmatprep.mubr.f32.mxu0 0.0
  %v1896 = vand.u32 %v1054, 4294901760
  %1897 = vmatmul.mubr.f32.gmra.mxu0 %v1896
  %v1898 = vpop.f32.mrf.mxu0
  %v1899 = vadd.f32 %v1776, %v1898
  %v1900 = vpop.f32.mrf.mxu0
  %1901 = vmatprep.mubr.f32.mxu0 0.0
  %v1902 = vand.u32 %v1057, 4294901760
  %1903 = vmatmul.mubr.f32.gmra.mxu0 %v1902
  %v1904 = vpop.f32.mrf.mxu0
  %v1905 = vadd.f32 %v1782, %v1904
  %v1906 = vpop.f32.mrf.mxu0
  %1907 = vmatprep.mubr.f32.mxu0 0.0
  %v1908 = vand.u32 %v1060, 4294901760
  %1909 = vmatmul.mubr.f32.gmra.mxu0 %v1908
  %v1910 = vpop.f32.mrf.mxu0
  %v1911 = vadd.f32 %v1788, %v1910
  %v1912 = vpop.f32.mrf.mxu0
  %1913 = vmatprep.mubr.f32.mxu0 0.0
  %v1914 = vand.u32 %v1063, 4294901760
  %1915 = vmatmul.mubr.f32.gmra.mxu0 %v1914
  %v1916 = vpop.f32.mrf.mxu0
  %v1917 = vadd.f32 %v1794, %v1916
  %v1918 = vpop.f32.mrf.mxu0
  %1919 = vmatprep.mubr.f32.mxu0 0.0
  %v1920 = vand.u32 %v1066, 4294901760
  %1921 = vmatmul.mubr.f32.gmra.mxu0 %v1920
  %v1922 = vpop.f32.mrf.mxu0
  %v1923 = vadd.f32 %v1800, %v1922
  %v1924 = vpop.f32.mrf.mxu0
  %1925 = vmatprep.mubr.f32.mxu0 0.0
  %v1926 = vand.u32 %v1069, 4294901760
  %1927 = vmatmul.mubr.f32.gmra.mxu0 %v1926
  %v1928 = vpop.f32.mrf.mxu0
  %v1929 = vadd.f32 %v1806, %v1928
  %v1930 = vpop.f32.mrf.mxu0
  %1931 = vmatprep.mubr.f32.mxu0 0.0
  %v1932 = vand.u32 %v1072, 4294901760
  %1933 = vmatmul.mubr.f32.gmra.mxu0 %v1932
  %v1934 = vpop.f32.mrf.mxu0
  %v1935 = vadd.f32 %v1812, %v1934
  %v1936 = vpop.f32.mrf.mxu0
  %1937 = vdwg.mxu0
  %1938 = vst [vmem:[%s4] sm:$0xff] %v1893
  %1939 = vst [vmem:[%s4 + $0x8] sm:$0xff] %v1899
  %1940 = vst [vmem:[%s4 + $0x10] sm:$0xff] %v1905
  %1941 = vst [vmem:[%s4 + $0x18] sm:$0xff] %v1911
  %1942 = vst [vmem:[%s4 + $0x20] sm:$0xff] %v1917
  %1943 = vst [vmem:[%s4 + $0x28] sm:$0xff] %v1923
  %1944 = vst [vmem:[%s4 + $0x30] sm:$0xff] %v1929
  %1945 = vst [vmem:[%s4 + $0x38] sm:$0xff] %v1935
  // Predicated region
  $region18: #{global_filter_apply.1} parent=0 // pred_check
    _
  $region19: #{global_filter_apply.1} parent=0 // pred_check_branch
    %1947 = sbr.rel (0) target = $region21
  $region20: #{global_filter_apply.1} parent=0 // pred_region
    _
  $region21: #{global_filter_apply.1} parent=0 // pred_fallthru
    _
  // Predicated region
  $region22: #{global_filter_apply.1} parent=0 // pred_check
    _
  $region23: #{global_filter_apply.1} parent=0 // pred_check_branch
    %1949 = sbr.rel (0) target = $region25
  $region24: #{global_filter_apply.1} parent=0 // pred_region
    _
  $region25: #{global_filter_apply.1} parent=0 // pred_fallthru
    _

</llo_original>
